<compile_context>
chip_gen: v7x
topology: tpu7x:2x2x1
jax: 0.10.0
libtpu: 0.0.40
codegen_flags: <defaults>
</compile_context>

<pallas_src>
import jax
import jax.numpy as jnp
from jax.experimental import pallas as pl
from jax.experimental.pallas import tpu as pltpu


def _round_up(n, m):
    return ((n + m - 1) // m) * m


def _pad2(a, rows, cols):
    return jnp.pad(a, ((0, rows - a.shape[0]), (0, cols - a.shape[1])))


def _row_start(t, tb):
    start = t * tb
    if isinstance(t, int):
        return start
    return pl.multiple_of(start, tb)


def _make_fused_rnn_kernel(num_layers, T, TB, H_p, O_p):
    """Fused multi-layer RNN + fc.

    Kernel refs (in order):
      xw0      (T, TB, H_p)   precomputed x @ Wih0 + b0, time-major
      whh0     (H_p, H_p)
      [wih_l, whh_l, b_l]     for l = 1 .. num_layers-1
      w_fc     (H_p, O_p), b_fc (1, O_p)
      out      (num_layers, TB, O_p)
      xw_scr, y_scr           VMEM scratch, each (T*TB, H_p)
    """

    def kernel(*refs):
        xw0_ref = refs[0]
        whh0_ref = refs[1]
        upper = refs[2:2 + 3 * (num_layers - 1)]
        w_fc_ref = refs[2 + 3 * (num_layers - 1)]
        b_fc_ref = refs[3 + 3 * (num_layers - 1)]
        out_ref = refs[4 + 3 * (num_layers - 1)]
        xw_scr = refs[5 + 3 * (num_layers - 1)]
        y_scr = refs[6 + 3 * (num_layers - 1)]

        def run_recurrence(read_xw, whh_ref, write_y):
            # Keep W_hh resident in vregs only while small (<=128x128 f32 =
            # 16 vregs); otherwise let each dot read it straight from VMEM to
            # avoid vreg spills across the unrolled loop.
            if H_p <= 128:
                whh = whh_ref[...]
                rec = lambda h, _w=whh: jnp.dot(
                    h, _w, preferred_element_type=jnp.float32)
            else:
                rec = lambda h, _r=whh_ref: jnp.dot(
                    h, _r[...], preferred_element_type=jnp.float32)

            def step(t, h):
                # Only tanh(xW[t] + h @ W_hh): the input projection and bias
                # were hoisted off the serial critical path.
                h_new = jnp.tanh(read_xw(t) + rec(h))
                if write_y:
                    y_scr[pl.ds(_row_start(t, TB), TB), :] = h_new
                return h_new

            h = jnp.zeros((TB, H_p), jnp.float32)
            if T <= 32:
                # Fully unrolled serial recurrence (trace-time): gives the
                # scheduler visibility to overlap MXU push/pop, tanh (EUP)
                # and the y store of consecutive steps.
                for t in range(T):
                    h = step(t, h)
                return h
            return jax.lax.fori_loop(0, T, step, h, unroll=8)

        def emit_fc(layer, h_final):
            # fc fused in-kernel: h_final is already resident on-chip.
            out_ref[layer] = (
                jnp.dot(h_final, w_fc_ref[...],
                        preferred_element_type=jnp.float32)
                + b_fc_ref[...]
            )

        # ---- layer 0: input projection was precomputed on the host ----
        hT = run_recurrence(lambda t: xw0_ref[t], whh0_ref,
                            write_y=num_layers > 1)
        emit_fc(0, hT)

        # ---- layers 1 .. L-1 ----
        for l in range(1, num_layers):
            wih_ref = upper[3 * (l - 1)]
            whh_ref = upper[3 * (l - 1) + 1]
            b_ref = upper[3 * (l - 1) + 2]

            # Hoisted input projection for the whole sequence: one MXU matmul
            # (T*TB, H) x (H, H), bias folded in once.
            xw_scr[...] = (
                jnp.dot(y_scr[...], wih_ref[...],
                        preferred_element_type=jnp.float32)
                + b_ref[...]
            )

            def read_xw(t):
                return xw_scr[pl.ds(_row_start(t, TB), TB), :]

            # Last layer: its per-step outputs are never consumed, so skip
            # materializing y entirely.
            hT = run_recurrence(read_xw, whh_ref,
                                write_y=l < num_layers - 1)
            emit_fc(l, hT)

    return kernel


def _vmem_limit_bytes(num_layers, T, TB, H_p, O_p):
    f32 = 4
    blocks = (T * TB * H_p                                  # xw0 block
              + (1 + 2 * (num_layers - 1)) * H_p * H_p      # W_hh / W_ih
              + (num_layers - 1) * H_p                      # biases
              + H_p * O_p + O_p                             # fc weights
              + num_layers * TB * O_p)                      # out block
    scratch = 2 * T * TB * H_p
    est = (2 * blocks + scratch) * f32                      # double-buffering
    # Explicit limit with headroom; capped well below v7x's 64 MiB physical.
    return int(min(max(2 * est, 16 * 1024 * 1024), 48 * 1024 * 1024))


@jax.jit
def rnn_forward(x, params):
    """Replicates RNN.forward: zero-init hidden, multi-layer tanh RNN
    (batch_first), fc applied to h_out.view(-1, hidden) -> (L*B, O)."""
    layers = params["layers"]
    w_fc, b_fc = params["fc"]
    L = len(layers)
    B, T, _ = x.shape
    H = layers[0][1].shape[0]
    O = w_fc.shape[1]

    TB = min(_round_up(B, 8), 128)          # batch tile (sublane-aligned)
    B_pad = _round_up(B, TB)
    H_p = _round_up(H, 128)                 # lane-dense hidden
    O_p = _round_up(O, 128)                 # lane-dense output

    # Layer-0 input projection, hoisted out of the recurrence. The einsum also
    # emits the (T, B, H) time-major layout directly, so there is no
    # standalone HBM transpose pass. Padding is zero, so padded lanes/rows
    # stay zero through the recurrence.
    wih0, whh0, b0 = layers[0]
    xw0 = jnp.einsum("btd,dh->tbh", x.astype(jnp.float32), wih0) + b0
    xw0 = jnp.pad(xw0, ((0, 0), (0, B_pad - B), (0, H_p - H)))

    whh0_p = _pad2(whh0, H_p, H_p)
    upper_args = []
    for l in range(1, L):
        wih, whh, b = layers[l]
        upper_args += [_pad2(wih, H_p, H_p), _pad2(whh, H_p, H_p),
                       _pad2(b, 1, H_p)]
    w_fc_p = _pad2(w_fc, H_p, O_p)
    b_fc_p = _pad2(b_fc, 1, O_p)

    const = lambda i: (0, 0)
    in_specs = [pl.BlockSpec((T, TB, H_p), lambda i: (0, i, 0)),   # xw0
                pl.BlockSpec((H_p, H_p), const)]                   # whh0
    for _ in range(L - 1):
        in_specs += [pl.BlockSpec((H_p, H_p), const),              # wih_l
                     pl.BlockSpec((H_p, H_p), const),              # whh_l
                     pl.BlockSpec((1, H_p), const)]                # b_l
    in_specs += [pl.BlockSpec((H_p, O_p), const),                  # w_fc
                 pl.BlockSpec((1, O_p), const)]                    # b_fc

    out_padded = pl.pallas_call(
        _make_fused_rnn_kernel(L, T, TB, H_p, O_p),
        out_shape=jax.ShapeDtypeStruct((L, B_pad, O_p), jnp.float32),
        grid=(B_pad // TB,),
        in_specs=in_specs,
        out_specs=pl.BlockSpec((L, TB, O_p), lambda i: (0, i, 0)),
        scratch_shapes=[pltpu.VMEM((T * TB, H_p), jnp.float32),
                        pltpu.VMEM((T * TB, H_p), jnp.float32)],
        compiler_params=pltpu.CompilerParams(
            dimension_semantics=("parallel",),
            vmem_limit_bytes=_vmem_limit_bytes(L, T, TB, H_p, O_p)),
    )(xw0, whh0_p, *upper_args, w_fc_p, b_fc_p)

    # h_out.view(-1, hidden) @ W_fc^T + b == out; drop padding, flatten.
    return out_padded[:, :B, :O].reshape(L * B, O)


def init_params(key, input_size, hidden_size, output_size, num_layers):
    """Deterministic init mirroring PyTorch's uniform(-1/sqrt(H), 1/sqrt(H))."""
    params = {"layers": [], "fc": None}
    bound = 1.0 / jnp.sqrt(jnp.float32(hidden_size))
    for l in range(num_layers):
        din = input_size if l == 0 else hidden_size
        key, k1, k2, k3, k4 = jax.random.split(key, 5)
        # stored transposed so the kernel computes x @ W
        wih = jax.random.uniform(k1, (din, hidden_size), jnp.float32, -bound, bound)
        whh = jax.random.uniform(k2, (hidden_size, hidden_size), jnp.float32, -bound, bound)
        b_ih = jax.random.uniform(k3, (hidden_size,), jnp.float32, -bound, bound)
        b_hh = jax.random.uniform(k4, (hidden_size,), jnp.float32, -bound, bound)
        params["layers"].append((wih, whh, (b_ih + b_hh).reshape(1, hidden_size)))
    key, k5, k6 = jax.random.split(key, 3)
    w_fc_t = jax.random.uniform(k5, (hidden_size, output_size), jnp.float32, -bound, bound)
    b_fc = jax.random.uniform(k6, (output_size,), jnp.float32, -bound, bound).reshape(1, output_size)
    params["fc"] = (w_fc_t, b_fc)
    return params


def rnn_forward_ref(x, params):
    """Pure-JAX reference for sanity checking (f32, unpadded)."""
    layers = params["layers"]
    w_fc, b_fc = params["fc"]
    B, T, _ = x.shape
    H = layers[0][1].shape[0]
    layer_in = jnp.transpose(x, (1, 0, 2)).astype(jnp.float32)
    h_finals = []
    for (wih, whh, b) in layers:
        h = jnp.zeros((B, H), jnp.float32)
        ys = []
        for t in range(T):
            h = jnp.tanh(layer_in[t] @ wih + h @ whh + b)
            ys.append(h)
        layer_in = jnp.stack(ys, 0)
        h_finals.append(h)
    h_flat = jnp.stack(h_finals, 0).reshape(-1, H)
    return h_flat @ w_fc + b_fc


if __name__ == "__main__":
    batch = 2
    seq = 8
    input_size = 16
    hidden_size = 32
    output_size = 8
    num_layers = 2

    key = jax.random.PRNGKey(0)
    key, kx, kp = jax.random.split(key, 3)
    x = jax.random.normal(kx, (batch, seq, input_size), jnp.float32)
    params = init_params(kp, input_size, hidden_size, output_size, num_layers)

    out = rnn_forward(x, params)
    out = jax.block_until_ready(out)

    ref = rnn_forward_ref(x, params)
    assert out.shape == (num_layers * batch, output_size), out.shape
    err = float(jnp.max(jnp.abs(out - ref)))
    assert jnp.allclose(out, ref, atol=2e-5, rtol=1e-5), err

    print("KERNEL_OK")
</pallas_src>

<mosaic_0001>
module attributes {stable_mosaic.version = 11 : i64} {
  func.func @kernel(%arg0: i32, %arg1: memref<8x8x128xf32, #tpu.memory_space<vmem>>, %arg2: memref<128x128xf32, #tpu.memory_space<vmem>>, %arg3: memref<128x128xf32, #tpu.memory_space<vmem>>, %arg4: memref<128x128xf32, #tpu.memory_space<vmem>>, %arg5: memref<1x128xf32, #tpu.memory_space<vmem>>, %arg6: memref<128x128xf32, #tpu.memory_space<vmem>>, %arg7: memref<1x128xf32, #tpu.memory_space<vmem>>, %arg8: memref<2x8x128xf32, #tpu.memory_space<vmem>>, %arg9: memref<64x128xf32, #tpu.memory_space<vmem>>, %arg10: memref<64x128xf32, #tpu.memory_space<vmem>>) attributes {dimension_semantics = [#tpu.dimension_semantics<parallel>], iteration_bounds = array<i64: 1>, scalar_prefetch = 0 : i64, scratch_operands = 2 : i64, tpu.core_type = #tpu.core_type<tc>, window_params = [{transform_indices = @transform_0, window_bounds = array<i64: 8, 8, 128>}, {pipeline_mode = #tpu.pipeline_mode<synchronous>, transform_indices = @transform_1, window_bounds = array<i64: 128, 128>}, {pipeline_mode = #tpu.pipeline_mode<synchronous>, transform_indices = @transform_2, window_bounds = array<i64: 128, 128>}, {pipeline_mode = #tpu.pipeline_mode<synchronous>, transform_indices = @transform_3, window_bounds = array<i64: 128, 128>}, {pipeline_mode = #tpu.pipeline_mode<synchronous>, transform_indices = @transform_4, window_bounds = array<i64: 1, 128>}, {pipeline_mode = #tpu.pipeline_mode<synchronous>, transform_indices = @transform_5, window_bounds = array<i64: 128, 128>}, {pipeline_mode = #tpu.pipeline_mode<synchronous>, transform_indices = @transform_6, window_bounds = array<i64: 1, 128>}, {transform_indices = @transform_7, window_bounds = array<i64: 2, 8, 128>}]} {
    %c0 = arith.constant 0 : index
    %c0_0 = arith.constant 0 : index
    %0 = vector.load %arg2[%c0, %c0_0] : memref<128x128xf32, #tpu.memory_space<vmem>>, vector<128x128xf32>
    %cst = arith.constant 0.000000e+00 : f32
    %1 = vector.broadcast %cst : f32 to vector<8x128xf32>
    %c0_1 = arith.constant 0 : index
    %c0_2 = arith.constant 0 : index
    %c0_3 = arith.constant 0 : index
    %2 = vector.load %arg1[%c0_1, %c0_2, %c0_3] : memref<8x8x128xf32, #tpu.memory_space<vmem>>, vector<1x8x128xf32>
    %3 = vector.shape_cast %2 : vector<1x8x128xf32> to vector<8x128xf32>
    %cst_4 = arith.constant dense<0.000000e+00> : vector<8x128xf32>
    %4 = tpu.matmul %1, %0, %cst_4 {dimension_numbers = #tpu.dot_dimension_numbers<[1], [0], [0], [1], [0, 0, 1, 1], [], []>} : vector<8x128xf32>, vector<128x128xf32>, vector<8x128xf32> -> vector<8x128xf32>
    %5 = arith.addf %3, %4 : vector<8x128xf32>
    %6 = math.tanh %5 : vector<8x128xf32>
    %c0_5 = arith.constant 0 : index
    %c0_6 = arith.constant 0 : index
    %7 = vector.load %arg10[%c0_5, %c0_6] : memref<64x128xf32, #tpu.memory_space<vmem>>, vector<8x128xf32>
    tpu.vector_store %arg10[%c0_5, %c0_6], %6 {strides = array<i32>} : memref<64x128xf32, #tpu.memory_space<vmem>>, vector<8x128xf32>,
    %c1 = arith.constant 1 : index
    %c0_7 = arith.constant 0 : index
    %c0_8 = arith.constant 0 : index
    %8 = vector.load %arg1[%c1, %c0_7, %c0_8] : memref<8x8x128xf32, #tpu.memory_space<vmem>>, vector<1x8x128xf32>
    %9 = vector.shape_cast %8 : vector<1x8x128xf32> to vector<8x128xf32>
    %cst_9 = arith.constant dense<0.000000e+00> : vector<8x128xf32>
    %10 = tpu.matmul %6, %0, %cst_9 {dimension_numbers = #tpu.dot_dimension_numbers<[1], [0], [0], [1], [0, 0, 1, 1], [], []>} : vector<8x128xf32>, vector<128x128xf32>, vector<8x128xf32> -> vector<8x128xf32>
    %11 = arith.addf %9, %10 : vector<8x128xf32>
    %12 = math.tanh %11 : vector<8x128xf32>
    %c8 = arith.constant 8 : index
    %c0_10 = arith.constant 0 : index
    %13 = vector.load %arg10[%c8, %c0_10] : memref<64x128xf32, #tpu.memory_space<vmem>>, vector<8x128xf32>
    tpu.vector_store %arg10[%c8, %c0_10], %12 {strides = array<i32>} : memref<64x128xf32, #tpu.memory_space<vmem>>, vector<8x128xf32>,
    %c2 = arith.constant 2 : index
    %c0_11 = arith.constant 0 : index
    %c0_12 = arith.constant 0 : index
    %14 = vector.load %arg1[%c2, %c0_11, %c0_12] : memref<8x8x128xf32, #tpu.memory_space<vmem>>, vector<1x8x128xf32>
    %15 = vector.shape_cast %14 : vector<1x8x128xf32> to vector<8x128xf32>
    %cst_13 = arith.constant dense<0.000000e+00> : vector<8x128xf32>
    %16 = tpu.matmul %12, %0, %cst_13 {dimension_numbers = #tpu.dot_dimension_numbers<[1], [0], [0], [1], [0, 0, 1, 1], [], []>} : vector<8x128xf32>, vector<128x128xf32>, vector<8x128xf32> -> vector<8x128xf32>
    %17 = arith.addf %15, %16 : vector<8x128xf32>
    %18 = math.tanh %17 : vector<8x128xf32>
    %c16 = arith.constant 16 : index
    %c0_14 = arith.constant 0 : index
    %19 = vector.load %arg10[%c16, %c0_14] : memref<64x128xf32, #tpu.memory_space<vmem>>, vector<8x128xf32>
    tpu.vector_store %arg10[%c16, %c0_14], %18 {strides = array<i32>} : memref<64x128xf32, #tpu.memory_space<vmem>>, vector<8x128xf32>,
    %c3 = arith.constant 3 : index
    %c0_15 = arith.constant 0 : index
    %c0_16 = arith.constant 0 : index
    %20 = vector.load %arg1[%c3, %c0_15, %c0_16] : memref<8x8x128xf32, #tpu.memory_space<vmem>>, vector<1x8x128xf32>
    %21 = vector.shape_cast %20 : vector<1x8x128xf32> to vector<8x128xf32>
    %cst_17 = arith.constant dense<0.000000e+00> : vector<8x128xf32>
    %22 = tpu.matmul %18, %0, %cst_17 {dimension_numbers = #tpu.dot_dimension_numbers<[1], [0], [0], [1], [0, 0, 1, 1], [], []>} : vector<8x128xf32>, vector<128x128xf32>, vector<8x128xf32> -> vector<8x128xf32>
    %23 = arith.addf %21, %22 : vector<8x128xf32>
    %24 = math.tanh %23 : vector<8x128xf32>
    %c24 = arith.constant 24 : index
    %c0_18 = arith.constant 0 : index
    %25 = vector.load %arg10[%c24, %c0_18] : memref<64x128xf32, #tpu.memory_space<vmem>>, vector<8x128xf32>
    tpu.vector_store %arg10[%c24, %c0_18], %24 {strides = array<i32>} : memref<64x128xf32, #tpu.memory_space<vmem>>, vector<8x128xf32>,
    %c4 = arith.constant 4 : index
    %c0_19 = arith.constant 0 : index
    %c0_20 = arith.constant 0 : index
    %26 = vector.load %arg1[%c4, %c0_19, %c0_20] : memref<8x8x128xf32, #tpu.memory_space<vmem>>, vector<1x8x128xf32>
    %27 = vector.shape_cast %26 : vector<1x8x128xf32> to vector<8x128xf32>
    %cst_21 = arith.constant dense<0.000000e+00> : vector<8x128xf32>
    %28 = tpu.matmul %24, %0, %cst_21 {dimension_numbers = #tpu.dot_dimension_numbers<[1], [0], [0], [1], [0, 0, 1, 1], [], []>} : vector<8x128xf32>, vector<128x128xf32>, vector<8x128xf32> -> vector<8x128xf32>
    %29 = arith.addf %27, %28 : vector<8x128xf32>
    %30 = math.tanh %29 : vector<8x128xf32>
    %c32 = arith.constant 32 : index
    %c0_22 = arith.constant 0 : index
    %31 = vector.load %arg10[%c32, %c0_22] : memref<64x128xf32, #tpu.memory_space<vmem>>, vector<8x128xf32>
    tpu.vector_store %arg10[%c32, %c0_22], %30 {strides = array<i32>} : memref<64x128xf32, #tpu.memory_space<vmem>>, vector<8x128xf32>,
    %c5 = arith.constant 5 : index
    %c0_23 = arith.constant 0 : index
    %c0_24 = arith.constant 0 : index
    %32 = vector.load %arg1[%c5, %c0_23, %c0_24] : memref<8x8x128xf32, #tpu.memory_space<vmem>>, vector<1x8x128xf32>
    %33 = vector.shape_cast %32 : vector<1x8x128xf32> to vector<8x128xf32>
    %cst_25 = arith.constant dense<0.000000e+00> : vector<8x128xf32>
    %34 = tpu.matmul %30, %0, %cst_25 {dimension_numbers = #tpu.dot_dimension_numbers<[1], [0], [0], [1], [0, 0, 1, 1], [], []>} : vector<8x128xf32>, vector<128x128xf32>, vector<8x128xf32> -> vector<8x128xf32>
    %35 = arith.addf %33, %34 : vector<8x128xf32>
    %36 = math.tanh %35 : vector<8x128xf32>
    %c40 = arith.constant 40 : index
    %c0_26 = arith.constant 0 : index
    %37 = vector.load %arg10[%c40, %c0_26] : memref<64x128xf32, #tpu.memory_space<vmem>>, vector<8x128xf32>
    tpu.vector_store %arg10[%c40, %c0_26], %36 {strides = array<i32>} : memref<64x128xf32, #tpu.memory_space<vmem>>, vector<8x128xf32>,
    %c6 = arith.constant 6 : index
    %c0_27 = arith.constant 0 : index
    %c0_28 = arith.constant 0 : index
    %38 = vector.load %arg1[%c6, %c0_27, %c0_28] : memref<8x8x128xf32, #tpu.memory_space<vmem>>, vector<1x8x128xf32>
    %39 = vector.shape_cast %38 : vector<1x8x128xf32> to vector<8x128xf32>
    %cst_29 = arith.constant dense<0.000000e+00> : vector<8x128xf32>
    %40 = tpu.matmul %36, %0, %cst_29 {dimension_numbers = #tpu.dot_dimension_numbers<[1], [0], [0], [1], [0, 0, 1, 1], [], []>} : vector<8x128xf32>, vector<128x128xf32>, vector<8x128xf32> -> vector<8x128xf32>
    %41 = arith.addf %39, %40 : vector<8x128xf32>
    %42 = math.tanh %41 : vector<8x128xf32>
    %c48 = arith.constant 48 : index
    %c0_30 = arith.constant 0 : index
    %43 = vector.load %arg10[%c48, %c0_30] : memref<64x128xf32, #tpu.memory_space<vmem>>, vector<8x128xf32>
    tpu.vector_store %arg10[%c48, %c0_30], %42 {strides = array<i32>} : memref<64x128xf32, #tpu.memory_space<vmem>>, vector<8x128xf32>,
    %c7 = arith.constant 7 : index
    %c0_31 = arith.constant 0 : index
    %c0_32 = arith.constant 0 : index
    %44 = vector.load %arg1[%c7, %c0_31, %c0_32] : memref<8x8x128xf32, #tpu.memory_space<vmem>>, vector<1x8x128xf32>
    %45 = vector.shape_cast %44 : vector<1x8x128xf32> to vector<8x128xf32>
    %cst_33 = arith.constant dense<0.000000e+00> : vector<8x128xf32>
    %46 = tpu.matmul %42, %0, %cst_33 {dimension_numbers = #tpu.dot_dimension_numbers<[1], [0], [0], [1], [0, 0, 1, 1], [], []>} : vector<8x128xf32>, vector<128x128xf32>, vector<8x128xf32> -> vector<8x128xf32>
    %47 = arith.addf %45, %46 : vector<8x128xf32>
    %48 = math.tanh %47 : vector<8x128xf32>
    %c56 = arith.constant 56 : index
    %c0_34 = arith.constant 0 : index
    %49 = vector.load %arg10[%c56, %c0_34] : memref<64x128xf32, #tpu.memory_space<vmem>>, vector<8x128xf32>
    tpu.vector_store %arg10[%c56, %c0_34], %48 {strides = array<i32>} : memref<64x128xf32, #tpu.memory_space<vmem>>, vector<8x128xf32>,
    %c0_35 = arith.constant 0 : index
    %c0_36 = arith.constant 0 : index
    %50 = vector.load %arg6[%c0_35, %c0_36] : memref<128x128xf32, #tpu.memory_space<vmem>>, vector<128x128xf32>
    %cst_37 = arith.constant dense<0.000000e+00> : vector<8x128xf32>
    %51 = tpu.matmul %48, %50, %cst_37 {dimension_numbers = #tpu.dot_dimension_numbers<[1], [0], [0], [1], [0, 0, 1, 1], [], []>} : vector<8x128xf32>, vector<128x128xf32>, vector<8x128xf32> -> vector<8x128xf32>
    %c0_38 = arith.constant 0 : index
    %c0_39 = arith.constant 0 : index
    %52 = vector.load %arg7[%c0_38, %c0_39] : memref<1x128xf32, #tpu.memory_space<vmem>>, vector<1x128xf32>
    %53 = vector.broadcast %52 : vector<1x128xf32> to vector<8x128xf32>
    %54 = arith.addf %51, %53 : vector<8x128xf32>
    %c0_40 = arith.constant 0 : index
    %c0_41 = arith.constant 0 : index
    %c0_42 = arith.constant 0 : index
    %55 = vector.load %arg8[%c0_40, %c0_41, %c0_42] : memref<2x8x128xf32, #tpu.memory_space<vmem>>, vector<1x8x128xf32>
    %56 = vector.shape_cast %55 : vector<1x8x128xf32> to vector<8x128xf32>
    %57 = vector.shape_cast %54 : vector<8x128xf32> to vector<1x8x128xf32>
    tpu.vector_store %arg8[%c0_40, %c0_41, %c0_42], %57 {strides = array<i32>} : memref<2x8x128xf32, #tpu.memory_space<vmem>>, vector<1x8x128xf32>,
    %c0_43 = arith.constant 0 : index
    %c0_44 = arith.constant 0 : index
    %58 = vector.load %arg10[%c0_43, %c0_44] : memref<64x128xf32, #tpu.memory_space<vmem>>, vector<64x128xf32>
    %c0_45 = arith.constant 0 : index
    %c0_46 = arith.constant 0 : index
    %59 = vector.load %arg3[%c0_45, %c0_46] : memref<128x128xf32, #tpu.memory_space<vmem>>, vector<128x128xf32>
    %cst_47 = arith.constant dense<0.000000e+00> : vector<64x128xf32>
    %60 = tpu.matmul %58, %59, %cst_47 {dimension_numbers = #tpu.dot_dimension_numbers<[1], [0], [0], [1], [0, 0, 1, 1], [], []>} : vector<64x128xf32>, vector<128x128xf32>, vector<64x128xf32> -> vector<64x128xf32>
    %c0_48 = arith.constant 0 : index
    %c0_49 = arith.constant 0 : index
    %61 = vector.load %arg5[%c0_48, %c0_49] : memref<1x128xf32, #tpu.memory_space<vmem>>, vector<1x128xf32>
    %62 = vector.broadcast %61 : vector<1x128xf32> to vector<64x128xf32>
    %63 = arith.addf %60, %62 : vector<64x128xf32>
    %c0_50 = arith.constant 0 : index
    %c0_51 = arith.constant 0 : index
    %64 = vector.load %arg9[%c0_50, %c0_51] : memref<64x128xf32, #tpu.memory_space<vmem>>, vector<64x128xf32>
    tpu.vector_store %arg9[%c0_50, %c0_51], %63 {strides = array<i32>} : memref<64x128xf32, #tpu.memory_space<vmem>>, vector<64x128xf32>,
    %c0_52 = arith.constant 0 : index
    %c0_53 = arith.constant 0 : index
    %65 = vector.load %arg4[%c0_52, %c0_53] : memref<128x128xf32, #tpu.memory_space<vmem>>, vector<128x128xf32>
    %cst_54 = arith.constant 0.000000e+00 : f32
    %66 = vector.broadcast %cst_54 : f32 to vector<8x128xf32>
    %c0_55 = arith.constant 0 : index
    %c0_56 = arith.constant 0 : index
    %67 = vector.load %arg9[%c0_55, %c0_56] : memref<64x128xf32, #tpu.memory_space<vmem>>, vector<8x128xf32>
    %cst_57 = arith.constant dense<0.000000e+00> : vector<8x128xf32>
    %68 = tpu.matmul %66, %65, %cst_57 {dimension_numbers = #tpu.dot_dimension_numbers<[1], [0], [0], [1], [0, 0, 1, 1], [], []>} : vector<8x128xf32>, vector<128x128xf32>, vector<8x128xf32> -> vector<8x128xf32>
    %69 = arith.addf %67, %68 : vector<8x128xf32>
    %70 = math.tanh %69 : vector<8x128xf32>
    %c8_58 = arith.constant 8 : index
    %c0_59 = arith.constant 0 : index
    %71 = vector.load %arg9[%c8_58, %c0_59] : memref<64x128xf32, #tpu.memory_space<vmem>>, vector<8x128xf32>
    %cst_60 = arith.constant dense<0.000000e+00> : vector<8x128xf32>
    %72 = tpu.matmul %70, %65, %cst_60 {dimension_numbers = #tpu.dot_dimension_numbers<[1], [0], [0], [1], [0, 0, 1, 1], [], []>} : vector<8x128xf32>, vector<128x128xf32>, vector<8x128xf32> -> vector<8x128xf32>
    %73 = arith.addf %71, %72 : vector<8x128xf32>
    %74 = math.tanh %73 : vector<8x128xf32>
    %c16_61 = arith.constant 16 : index
    %c0_62 = arith.constant 0 : index
    %75 = vector.load %arg9[%c16_61, %c0_62] : memref<64x128xf32, #tpu.memory_space<vmem>>, vector<8x128xf32>
    %cst_63 = arith.constant dense<0.000000e+00> : vector<8x128xf32>
    %76 = tpu.matmul %74, %65, %cst_63 {dimension_numbers = #tpu.dot_dimension_numbers<[1], [0], [0], [1], [0, 0, 1, 1], [], []>} : vector<8x128xf32>, vector<128x128xf32>, vector<8x128xf32> -> vector<8x128xf32>
    %77 = arith.addf %75, %76 : vector<8x128xf32>
    %78 = math.tanh %77 : vector<8x128xf32>
    %c24_64 = arith.constant 24 : index
    %c0_65 = arith.constant 0 : index
    %79 = vector.load %arg9[%c24_64, %c0_65] : memref<64x128xf32, #tpu.memory_space<vmem>>, vector<8x128xf32>
    %cst_66 = arith.constant dense<0.000000e+00> : vector<8x128xf32>
    %80 = tpu.matmul %78, %65, %cst_66 {dimension_numbers = #tpu.dot_dimension_numbers<[1], [0], [0], [1], [0, 0, 1, 1], [], []>} : vector<8x128xf32>, vector<128x128xf32>, vector<8x128xf32> -> vector<8x128xf32>
    %81 = arith.addf %79, %80 : vector<8x128xf32>
    %82 = math.tanh %81 : vector<8x128xf32>
    %c32_67 = arith.constant 32 : index
    %c0_68 = arith.constant 0 : index
    %83 = vector.load %arg9[%c32_67, %c0_68] : memref<64x128xf32, #tpu.memory_space<vmem>>, vector<8x128xf32>
    %cst_69 = arith.constant dense<0.000000e+00> : vector<8x128xf32>
    %84 = tpu.matmul %82, %65, %cst_69 {dimension_numbers = #tpu.dot_dimension_numbers<[1], [0], [0], [1], [0, 0, 1, 1], [], []>} : vector<8x128xf32>, vector<128x128xf32>, vector<8x128xf32> -> vector<8x128xf32>
    %85 = arith.addf %83, %84 : vector<8x128xf32>
    %86 = math.tanh %85 : vector<8x128xf32>
    %c40_70 = arith.constant 40 : index
    %c0_71 = arith.constant 0 : index
    %87 = vector.load %arg9[%c40_70, %c0_71] : memref<64x128xf32, #tpu.memory_space<vmem>>, vector<8x128xf32>
    %cst_72 = arith.constant dense<0.000000e+00> : vector<8x128xf32>
    %88 = tpu.matmul %86, %65, %cst_72 {dimension_numbers = #tpu.dot_dimension_numbers<[1], [0], [0], [1], [0, 0, 1, 1], [], []>} : vector<8x128xf32>, vector<128x128xf32>, vector<8x128xf32> -> vector<8x128xf32>
    %89 = arith.addf %87, %88 : vector<8x128xf32>
    %90 = math.tanh %89 : vector<8x128xf32>
    %c48_73 = arith.constant 48 : index
    %c0_74 = arith.constant 0 : index
    %91 = vector.load %arg9[%c48_73, %c0_74] : memref<64x128xf32, #tpu.memory_space<vmem>>, vector<8x128xf32>
    %cst_75 = arith.constant dense<0.000000e+00> : vector<8x128xf32>
    %92 = tpu.matmul %90, %65, %cst_75 {dimension_numbers = #tpu.dot_dimension_numbers<[1], [0], [0], [1], [0, 0, 1, 1], [], []>} : vector<8x128xf32>, vector<128x128xf32>, vector<8x128xf32> -> vector<8x128xf32>
    %93 = arith.addf %91, %92 : vector<8x128xf32>
    %94 = math.tanh %93 : vector<8x128xf32>
    %c56_76 = arith.constant 56 : index
    %c0_77 = arith.constant 0 : index
    %95 = vector.load %arg9[%c56_76, %c0_77] : memref<64x128xf32, #tpu.memory_space<vmem>>, vector<8x128xf32>
    %cst_78 = arith.constant dense<0.000000e+00> : vector<8x128xf32>
    %96 = tpu.matmul %94, %65, %cst_78 {dimension_numbers = #tpu.dot_dimension_numbers<[1], [0], [0], [1], [0, 0, 1, 1], [], []>} : vector<8x128xf32>, vector<128x128xf32>, vector<8x128xf32> -> vector<8x128xf32>
    %97 = arith.addf %95, %96 : vector<8x128xf32>
    %98 = math.tanh %97 : vector<8x128xf32>
    %c0_79 = arith.constant 0 : index
    %c0_80 = arith.constant 0 : index
    %99 = vector.load %arg6[%c0_79, %c0_80] : memref<128x128xf32, #tpu.memory_space<vmem>>, vector<128x128xf32>
    %cst_81 = arith.constant dense<0.000000e+00> : vector<8x128xf32>
    %100 = tpu.matmul %98, %99, %cst_81 {dimension_numbers = #tpu.dot_dimension_numbers<[1], [0], [0], [1], [0, 0, 1, 1], [], []>} : vector<8x128xf32>, vector<128x128xf32>, vector<8x128xf32> -> vector<8x128xf32>
    %c0_82 = arith.constant 0 : index
    %c0_83 = arith.constant 0 : index
    %101 = vector.load %arg7[%c0_82, %c0_83] : memref<1x128xf32, #tpu.memory_space<vmem>>, vector<1x128xf32>
    %102 = vector.broadcast %101 : vector<1x128xf32> to vector<8x128xf32>
    %103 = arith.addf %100, %102 : vector<8x128xf32>
    %c1_84 = arith.constant 1 : index
    %c0_85 = arith.constant 0 : index
    %c0_86 = arith.constant 0 : index
    %104 = vector.load %arg8[%c1_84, %c0_85, %c0_86] : memref<2x8x128xf32, #tpu.memory_space<vmem>>, vector<1x8x128xf32>
    %105 = vector.shape_cast %104 : vector<1x8x128xf32> to vector<8x128xf32>
    %106 = vector.shape_cast %103 : vector<8x128xf32> to vector<1x8x128xf32>
    tpu.vector_store %arg8[%c1_84, %c0_85, %c0_86], %106 {strides = array<i32>} : memref<2x8x128xf32, #tpu.memory_space<vmem>>, vector<1x8x128xf32>,
    return
  }
  func.func @transform_0(%arg0: i32) -> (i32, i32, i32) {
    %c0_i32 = arith.constant 0 : i32
    %c0_i32_0 = arith.constant 0 : i32
    %c0_i32_1 = arith.constant 0 : i32
    return %c0_i32, %arg0, %c0_i32_0 : i32, i32, i32
  }
  func.func @transform_1(%arg0: i32) -> (i32, i32) {
    %c0_i32 = arith.constant 0 : i32
    %c0_i32_0 = arith.constant 0 : i32
    %c0_i32_1 = arith.constant 0 : i32
    return %c0_i32, %c0_i32_0 : i32, i32
  }
  func.func @transform_2(%arg0: i32) -> (i32, i32) {
    %c0_i32 = arith.constant 0 : i32
    %c0_i32_0 = arith.constant 0 : i32
    %c0_i32_1 = arith.constant 0 : i32
    return %c0_i32, %c0_i32_0 : i32, i32
  }
  func.func @transform_3(%arg0: i32) -> (i32, i32) {
    %c0_i32 = arith.constant 0 : i32
    %c0_i32_0 = arith.constant 0 : i32
    %c0_i32_1 = arith.constant 0 : i32
    return %c0_i32, %c0_i32_0 : i32, i32
  }
  func.func @transform_4(%arg0: i32) -> (i32, i32) {
    %c0_i32 = arith.constant 0 : i32
    %c0_i32_0 = arith.constant 0 : i32
    %c0_i32_1 = arith.constant 0 : i32
    return %c0_i32, %c0_i32_0 : i32, i32
  }
  func.func @transform_5(%arg0: i32) -> (i32, i32) {
    %c0_i32 = arith.constant 0 : i32
    %c0_i32_0 = arith.constant 0 : i32
    %c0_i32_1 = arith.constant 0 : i32
    return %c0_i32, %c0_i32_0 : i32, i32
  }
  func.func @transform_6(%arg0: i32) -> (i32, i32) {
    %c0_i32 = arith.constant 0 : i32
    %c0_i32_0 = arith.constant 0 : i32
    %c0_i32_1 = arith.constant 0 : i32
    return %c0_i32, %c0_i32_0 : i32, i32
  }
  func.func @transform_7(%arg0: i32) -> (i32, i32, i32) {
    %c0_i32 = arith.constant 0 : i32
    %c0_i32_0 = arith.constant 0 : i32
    %c0_i32_1 = arith.constant 0 : i32
    return %c0_i32, %arg0, %c0_i32_0 : i32, i32, i32
  }
}

</mosaic_0001>

<llo_original>
// kernel: rnn_forward.1
$region0: #{rnn_forward.1}
  #allocation0 [shape = 'u32[]', space=smem, size = 0x4, offset = 0x4, fixed_abs, tag = 'smem constant byte address 0x4 - core index']
  #allocation1 [shape = 'u32[144,128]{1,0:T(1,128)}', space=vmem, size = 0x12000, scoped, tag = 'internal scratch']
  #allocation2 [shape = 'f32[64,128]{1,0:T(8,128)}', space=vmem, size = 0x8000, scoped, tag = 'scratch operand']
  #allocation3 [shape = 'f32[64,128]{1,0:T(8,128)}', space=vmem, size = 0x8000, scoped, tag = 'scratch operand']
  %s0 = inlined_call_operand.vmem [shape: f32[8,8,128], index: 0, kind: input, shape index: {}]
  %s1 = inlined_call_operand.vmem [shape: f32[128,128], index: 1, kind: input, shape index: {}]
  %s2 = inlined_call_operand.vmem [shape: f32[128,128], index: 2, kind: input, shape index: {}]
  %s3 = inlined_call_operand.vmem [shape: f32[128,128], index: 3, kind: input, shape index: {}]
  %s4 = inlined_call_operand.vmem [shape: f32[1,128], index: 4, kind: input, shape index: {}]
  %s5 = inlined_call_operand.vmem [shape: f32[128,128], index: 5, kind: input, shape index: {}]
  %s6 = inlined_call_operand.vmem [shape: f32[1,128], index: 6, kind: input, shape index: {}]
  %s7 = inlined_call_operand.vmem [shape: f32[2,8,128], index: 7, kind: output, shape index: {}]
  %s8 = sld [smem:[#allocation0]]
  $region38: #{rnn_forward.1} parent=0
    _
  %s10 = ssub.s32 1, %s8
  %s11 = scalar_select 0, %s10, %s8
  // Predicated region
  $region2: #{rnn_forward.1} parent=0 // pred_check
    _
  $region3: #{rnn_forward.1} parent=0 // pred_check_branch
    %13 = sbr.rel (0) target = $region5
  $region4: #{rnn_forward.1} parent=0 // pred_region
    _
  $region5: #{rnn_forward.1} parent=0 // pred_fallthru
    _
  // Predicated region
  $region6: #{rnn_forward.1} parent=0 // pred_check
    _
  $region7: #{rnn_forward.1} parent=0 // pred_check_branch
    %15 = sbr.rel (0) target = $region9
  $region8: #{rnn_forward.1} parent=0 // pred_region
    _
  $region9: #{rnn_forward.1} parent=0 // pred_fallthru
    _
  // Predicated region
  $region10: #{rnn_forward.1} parent=0 // pred_check
    _
  $region11: #{rnn_forward.1} parent=0 // pred_check_branch
    %17 = sbr.rel (0) target = $region13
  $region12: #{rnn_forward.1} parent=0 // pred_region
    _
  $region13: #{rnn_forward.1} parent=0 // pred_fallthru
    _
  // Predicated region
  $region14: #{rnn_forward.1} parent=0 // pred_check
    _
  $region15: #{rnn_forward.1} parent=0 // pred_check_branch
    %19 = sbr.rel (0) target = $region17
  $region16: #{rnn_forward.1} parent=0 // pred_region
    _
  $region17: #{rnn_forward.1} parent=0 // pred_fallthru
    _
  // Predicated region
  $region18: #{rnn_forward.1} parent=0 // pred_check
    _
  $region19: #{rnn_forward.1} parent=0 // pred_check_branch
    %21 = sbr.rel (0) target = $region21
  $region20: #{rnn_forward.1} parent=0 // pred_region
    _
  $region21: #{rnn_forward.1} parent=0 // pred_fallthru
    _
  // Predicated region
  $region22: #{rnn_forward.1} parent=0 // pred_check
    _
  $region23: #{rnn_forward.1} parent=0 // pred_check_branch
    %23 = sbr.rel (0) target = $region25
  $region24: #{rnn_forward.1} parent=0 // pred_region
    _
  $region25: #{rnn_forward.1} parent=0 // pred_fallthru
    _
  // Predicated region
  $region26: #{rnn_forward.1} parent=0 // pred_check
    _
  $region27: #{rnn_forward.1} parent=0 // pred_check_branch
    %25 = sbr.rel (0) target = $region29
  $region28: #{rnn_forward.1} parent=0 // pred_region
    _
  $region29: #{rnn_forward.1} parent=0 // pred_fallthru
    _
  %v26 = vld [vmem:[%s1] sm:$0xff]
  %v27 = vld [vmem:[%s1 + $0x8] sm:$0xff]
  %v28 = vld [vmem:[%s1 + $0x10] sm:$0xff]
  %v29 = vld [vmem:[%s1 + $0x18] sm:$0xff]
  %v30 = vld [vmem:[%s1 + $0x20] sm:$0xff]
  %v31 = vld [vmem:[%s1 + $0x28] sm:$0xff]
  %v32 = vld [vmem:[%s1 + $0x30] sm:$0xff]
  %v33 = vld [vmem:[%s1 + $0x38] sm:$0xff]
  %v34 = vld [vmem:[%s1 + $0x40] sm:$0xff]
  %v35 = vld [vmem:[%s1 + $0x48] sm:$0xff]
  %v36 = vld [vmem:[%s1 + $0x50] sm:$0xff]
  %v37 = vld [vmem:[%s1 + $0x58] sm:$0xff]
  %v38 = vld [vmem:[%s1 + $0x60] sm:$0xff]
  %v39 = vld [vmem:[%s1 + $0x68] sm:$0xff]
  %v40 = vld [vmem:[%s1 + $0x70] sm:$0xff]
  %v41 = vld [vmem:[%s1 + $0x78] sm:$0xff]
  %v42 = vld [vmem:[%s0] sm:$0xff]
  %43 = vmatprep.subr.mxu0 0.0
  %44 = vmatpush1.msra.mxu0 %v26
  %45 = vmatprep.subr.mxu0 0.0
  %46 = vmatpush1.msra.mxu0 %v27
  %47 = vmatprep.subr.mxu0 0.0
  %48 = vmatpush1.msra.mxu0 %v28
  %49 = vmatprep.subr.mxu0 0.0
  %50 = vmatpush1.msra.mxu0 %v29
  %51 = vmatprep.subr.mxu0 0.0
  %52 = vmatpush1.msra.mxu0 %v30
  %53 = vmatprep.subr.mxu0 0.0
  %54 = vmatpush1.msra.mxu0 %v31
  %55 = vmatprep.subr.mxu0 0.0
  %56 = vmatpush1.msra.mxu0 %v32
  %57 = vmatprep.subr.mxu0 0.0
  %58 = vmatpush1.msra.mxu0 %v33
  %59 = vmatprep.subr.mxu0 0.0
  %60 = vmatpush1.msra.mxu0 %v34
  %61 = vmatprep.subr.mxu0 0.0
  %62 = vmatpush1.msra.mxu0 %v35
  %63 = vmatprep.subr.mxu0 0.0
  %64 = vmatpush1.msra.mxu0 %v36
  %65 = vmatprep.subr.mxu0 0.0
  %66 = vmatpush1.msra.mxu0 %v37
  %67 = vmatprep.subr.mxu0 0.0
  %68 = vmatpush1.msra.mxu0 %v38
  %69 = vmatprep.subr.mxu0 0.0
  %70 = vmatpush1.msra.mxu0 %v39
  %71 = vmatprep.subr.mxu0 0.0
  %72 = vmatpush1.msra.mxu0 %v40
  %73 = vmatprep.subr.mxu0 0.0
  %74 = vmatpush1.msra.mxu0 %v41
  %75 = vmatprep.subr.mxu0 0.0
  %76 = vmatpush1.msra.mxu0 0.0
  %77 = vmatprep.subr.mxu0 0.0
  %78 = vmatpush1.msra.mxu0 0.0
  %79 = vmatprep.subr.mxu0 0.0
  %80 = vmatpush1.msra.mxu0 0.0
  %81 = vmatprep.subr.mxu0 0.0
  %82 = vmatpush1.msra.mxu0 0.0
  %83 = vmatprep.subr.mxu0 0.0
  %84 = vmatpush1.msra.mxu0 0.0
  %85 = vmatprep.subr.mxu0 0.0
  %86 = vmatpush1.msra.mxu0 0.0
  %87 = vmatprep.subr.mxu0 0.0
  %88 = vmatpush1.msra.mxu0 0.0
  %89 = vmatprep.subr.mxu0 0.0
  %90 = vmatpush1.msra.mxu0 0.0
  %91 = vmatprep.subr.mxu0 0.0
  %92 = vmatpush1.msra.mxu0 0.0
  %93 = vmatprep.subr.mxu0 0.0
  %94 = vmatpush1.msra.mxu0 0.0
  %95 = vmatprep.subr.mxu0 0.0
  %96 = vmatpush1.msra.mxu0 0.0
  %97 = vmatprep.subr.mxu0 0.0
  %98 = vmatpush1.msra.mxu0 0.0
  %99 = vmatprep.subr.mxu0 0.0
  %100 = vmatpush1.msra.mxu0 0.0
  %101 = vmatprep.subr.mxu0 0.0
  %102 = vmatpush1.msra.mxu0 0.0
  %103 = vmatprep.subr.mxu0 0.0
  %104 = vmatpush1.msra.mxu0 0.0
  %105 = vmatprep.subr.mxu0 0.0
  %106 = vmatpush1.msra.mxu0 0.0
  %107 = vmatprep.mubr.f32.mxu0 0.0
  %108 = vmatmul.mubr.f32.gmra.mrb[0].mxu0 0.0
  %v109 = vpop.f32.mrb[0].mxu0
  %v110 = vadd.f32 0.0, %v109
  %v111 = vpop.f32.mrb[0].mxu0
  %112 = vdwg.mxu0
  %v113 = vadd.f32 %v42, %v110
  %v114 = vtanh.pop %v113
  %115 = vst [vmem:[#allocation3] sm:$0xff] %v114
  %s116 = scalar_lea.vmem %s0, 8
  %v117 = vld [vmem:[%s116] sm:$0xff]
  %118 = vmatprep.subr.mxu0 0.0
  %119 = vmatpush1.msra.mxu0 %v26
  %120 = vmatprep.subr.mxu0 0.0
  %121 = vmatpush1.msra.mxu0 %v27
  %122 = vmatprep.subr.mxu0 0.0
  %123 = vmatpush1.msra.mxu0 %v28
  %124 = vmatprep.subr.mxu0 0.0
  %125 = vmatpush1.msra.mxu0 %v29
  %126 = vmatprep.subr.mxu0 0.0
  %127 = vmatpush1.msra.mxu0 %v30
  %128 = vmatprep.subr.mxu0 0.0
  %129 = vmatpush1.msra.mxu0 %v31
  %130 = vmatprep.subr.mxu0 0.0
  %131 = vmatpush1.msra.mxu0 %v32
  %132 = vmatprep.subr.mxu0 0.0
  %133 = vmatpush1.msra.mxu0 %v33
  %134 = vmatprep.subr.mxu0 0.0
  %135 = vmatpush1.msra.mxu0 %v34
  %136 = vmatprep.subr.mxu0 0.0
  %137 = vmatpush1.msra.mxu0 %v35
  %138 = vmatprep.subr.mxu0 0.0
  %139 = vmatpush1.msra.mxu0 %v36
  %140 = vmatprep.subr.mxu0 0.0
  %141 = vmatpush1.msra.mxu0 %v37
  %142 = vmatprep.subr.mxu0 0.0
  %143 = vmatpush1.msra.mxu0 %v38
  %144 = vmatprep.subr.mxu0 0.0
  %145 = vmatpush1.msra.mxu0 %v39
  %146 = vmatprep.subr.mxu0 0.0
  %147 = vmatpush1.msra.mxu0 %v40
  %148 = vmatprep.subr.mxu0 0.0
  %149 = vmatpush1.msra.mxu0 %v41
  %150 = vmatprep.subr.mxu0 0.0
  %151 = vmatpush1.msra.mxu0 0.0
  %152 = vmatprep.subr.mxu0 0.0
  %153 = vmatpush1.msra.mxu0 0.0
  %154 = vmatprep.subr.mxu0 0.0
  %155 = vmatpush1.msra.mxu0 0.0
  %156 = vmatprep.subr.mxu0 0.0
  %157 = vmatpush1.msra.mxu0 0.0
  %158 = vmatprep.subr.mxu0 0.0
  %159 = vmatpush1.msra.mxu0 0.0
  %160 = vmatprep.subr.mxu0 0.0
  %161 = vmatpush1.msra.mxu0 0.0
  %162 = vmatprep.subr.mxu0 0.0
  %163 = vmatpush1.msra.mxu0 0.0
  %164 = vmatprep.subr.mxu0 0.0
  %165 = vmatpush1.msra.mxu0 0.0
  %166 = vmatprep.subr.mxu0 0.0
  %167 = vmatpush1.msra.mxu0 0.0
  %168 = vmatprep.subr.mxu0 0.0
  %169 = vmatpush1.msra.mxu0 0.0
  %170 = vmatprep.subr.mxu0 0.0
  %171 = vmatpush1.msra.mxu0 0.0
  %172 = vmatprep.subr.mxu0 0.0
  %173 = vmatpush1.msra.mxu0 0.0
  %174 = vmatprep.subr.mxu0 0.0
  %175 = vmatpush1.msra.mxu0 0.0
  %176 = vmatprep.subr.mxu0 0.0
  %177 = vmatpush1.msra.mxu0 0.0
  %178 = vmatprep.subr.mxu0 0.0
  %179 = vmatpush1.msra.mxu0 0.0
  %180 = vmatprep.subr.mxu0 0.0
  %181 = vmatpush1.msra.mxu0 0.0
  %182 = vmatprep.mubr.f32.mxu0 0.0
  %183 = vmatmul.mubr.f32.gmra.mrb[0].mxu0 %v114
  %v184 = vpop.f32.mrb[0].mxu0
  %v185 = vadd.f32 0.0, %v184
  %v186 = vpop.f32.mrb[0].mxu0
  %187 = vdwg.mxu0
  %v188 = vadd.f32 %v117, %v185
  %v189 = vtanh.pop %v188
  %190 = vst [vmem:[#allocation3 + $0x8] sm:$0xff] %v189
  %s191 = scalar_lea.vmem %s0, 16
  %v192 = vld [vmem:[%s191] sm:$0xff]
  %193 = vmatprep.subr.mxu0 0.0
  %194 = vmatpush1.msra.mxu0 %v26
  %195 = vmatprep.subr.mxu0 0.0
  %196 = vmatpush1.msra.mxu0 %v27
  %197 = vmatprep.subr.mxu0 0.0
  %198 = vmatpush1.msra.mxu0 %v28
  %199 = vmatprep.subr.mxu0 0.0
  %200 = vmatpush1.msra.mxu0 %v29
  %201 = vmatprep.subr.mxu0 0.0
  %202 = vmatpush1.msra.mxu0 %v30
  %203 = vmatprep.subr.mxu0 0.0
  %204 = vmatpush1.msra.mxu0 %v31
  %205 = vmatprep.subr.mxu0 0.0
  %206 = vmatpush1.msra.mxu0 %v32
  %207 = vmatprep.subr.mxu0 0.0
  %208 = vmatpush1.msra.mxu0 %v33
  %209 = vmatprep.subr.mxu0 0.0
  %210 = vmatpush1.msra.mxu0 %v34
  %211 = vmatprep.subr.mxu0 0.0
  %212 = vmatpush1.msra.mxu0 %v35
  %213 = vmatprep.subr.mxu0 0.0
  %214 = vmatpush1.msra.mxu0 %v36
  %215 = vmatprep.subr.mxu0 0.0
  %216 = vmatpush1.msra.mxu0 %v37
  %217 = vmatprep.subr.mxu0 0.0
  %218 = vmatpush1.msra.mxu0 %v38
  %219 = vmatprep.subr.mxu0 0.0
  %220 = vmatpush1.msra.mxu0 %v39
  %221 = vmatprep.subr.mxu0 0.0
  %222 = vmatpush1.msra.mxu0 %v40
  %223 = vmatprep.subr.mxu0 0.0
  %224 = vmatpush1.msra.mxu0 %v41
  %225 = vmatprep.subr.mxu0 0.0
  %226 = vmatpush1.msra.mxu0 0.0
  %227 = vmatprep.subr.mxu0 0.0
  %228 = vmatpush1.msra.mxu0 0.0
  %229 = vmatprep.subr.mxu0 0.0
  %230 = vmatpush1.msra.mxu0 0.0
  %231 = vmatprep.subr.mxu0 0.0
  %232 = vmatpush1.msra.mxu0 0.0
  %233 = vmatprep.subr.mxu0 0.0
  %234 = vmatpush1.msra.mxu0 0.0
  %235 = vmatprep.subr.mxu0 0.0
  %236 = vmatpush1.msra.mxu0 0.0
  %237 = vmatprep.subr.mxu0 0.0
  %238 = vmatpush1.msra.mxu0 0.0
  %239 = vmatprep.subr.mxu0 0.0
  %240 = vmatpush1.msra.mxu0 0.0
  %241 = vmatprep.subr.mxu0 0.0
  %242 = vmatpush1.msra.mxu0 0.0
  %243 = vmatprep.subr.mxu0 0.0
  %244 = vmatpush1.msra.mxu0 0.0
  %245 = vmatprep.subr.mxu0 0.0
  %246 = vmatpush1.msra.mxu0 0.0
  %247 = vmatprep.subr.mxu0 0.0
  %248 = vmatpush1.msra.mxu0 0.0
  %249 = vmatprep.subr.mxu0 0.0
  %250 = vmatpush1.msra.mxu0 0.0
  %251 = vmatprep.subr.mxu0 0.0
  %252 = vmatpush1.msra.mxu0 0.0
  %253 = vmatprep.subr.mxu0 0.0
  %254 = vmatpush1.msra.mxu0 0.0
  %255 = vmatprep.subr.mxu0 0.0
  %256 = vmatpush1.msra.mxu0 0.0
  %257 = vmatprep.mubr.f32.mxu0 0.0
  %258 = vmatmul.mubr.f32.gmra.mrb[0].mxu0 %v189
  %v259 = vpop.f32.mrb[0].mxu0
  %v260 = vadd.f32 0.0, %v259
  %v261 = vpop.f32.mrb[0].mxu0
  %262 = vdwg.mxu0
  %v263 = vadd.f32 %v192, %v260
  %v264 = vtanh.pop %v263
  %265 = vst [vmem:[#allocation3 + $0x10] sm:$0xff] %v264
  %s266 = scalar_lea.vmem %s0, 24
  %v267 = vld [vmem:[%s266] sm:$0xff]
  %268 = vmatprep.subr.mxu0 0.0
  %269 = vmatpush1.msra.mxu0 %v26
  %270 = vmatprep.subr.mxu0 0.0
  %271 = vmatpush1.msra.mxu0 %v27
  %272 = vmatprep.subr.mxu0 0.0
  %273 = vmatpush1.msra.mxu0 %v28
  %274 = vmatprep.subr.mxu0 0.0
  %275 = vmatpush1.msra.mxu0 %v29
  %276 = vmatprep.subr.mxu0 0.0
  %277 = vmatpush1.msra.mxu0 %v30
  %278 = vmatprep.subr.mxu0 0.0
  %279 = vmatpush1.msra.mxu0 %v31
  %280 = vmatprep.subr.mxu0 0.0
  %281 = vmatpush1.msra.mxu0 %v32
  %282 = vmatprep.subr.mxu0 0.0
  %283 = vmatpush1.msra.mxu0 %v33
  %284 = vmatprep.subr.mxu0 0.0
  %285 = vmatpush1.msra.mxu0 %v34
  %286 = vmatprep.subr.mxu0 0.0
  %287 = vmatpush1.msra.mxu0 %v35
  %288 = vmatprep.subr.mxu0 0.0
  %289 = vmatpush1.msra.mxu0 %v36
  %290 = vmatprep.subr.mxu0 0.0
  %291 = vmatpush1.msra.mxu0 %v37
  %292 = vmatprep.subr.mxu0 0.0
  %293 = vmatpush1.msra.mxu0 %v38
  %294 = vmatprep.subr.mxu0 0.0
  %295 = vmatpush1.msra.mxu0 %v39
  %296 = vmatprep.subr.mxu0 0.0
  %297 = vmatpush1.msra.mxu0 %v40
  %298 = vmatprep.subr.mxu0 0.0
  %299 = vmatpush1.msra.mxu0 %v41
  %300 = vmatprep.subr.mxu0 0.0
  %301 = vmatpush1.msra.mxu0 0.0
  %302 = vmatprep.subr.mxu0 0.0
  %303 = vmatpush1.msra.mxu0 0.0
  %304 = vmatprep.subr.mxu0 0.0
  %305 = vmatpush1.msra.mxu0 0.0
  %306 = vmatprep.subr.mxu0 0.0
  %307 = vmatpush1.msra.mxu0 0.0
  %308 = vmatprep.subr.mxu0 0.0
  %309 = vmatpush1.msra.mxu0 0.0
  %310 = vmatprep.subr.mxu0 0.0
  %311 = vmatpush1.msra.mxu0 0.0
  %312 = vmatprep.subr.mxu0 0.0
  %313 = vmatpush1.msra.mxu0 0.0
  %314 = vmatprep.subr.mxu0 0.0
  %315 = vmatpush1.msra.mxu0 0.0
  %316 = vmatprep.subr.mxu0 0.0
  %317 = vmatpush1.msra.mxu0 0.0
  %318 = vmatprep.subr.mxu0 0.0
  %319 = vmatpush1.msra.mxu0 0.0
  %320 = vmatprep.subr.mxu0 0.0
  %321 = vmatpush1.msra.mxu0 0.0
  %322 = vmatprep.subr.mxu0 0.0
  %323 = vmatpush1.msra.mxu0 0.0
  %324 = vmatprep.subr.mxu0 0.0
  %325 = vmatpush1.msra.mxu0 0.0
  %326 = vmatprep.subr.mxu0 0.0
  %327 = vmatpush1.msra.mxu0 0.0
  %328 = vmatprep.subr.mxu0 0.0
  %329 = vmatpush1.msra.mxu0 0.0
  %330 = vmatprep.subr.mxu0 0.0
  %331 = vmatpush1.msra.mxu0 0.0
  %332 = vmatprep.mubr.f32.mxu0 0.0
  %333 = vmatmul.mubr.f32.gmra.mrb[0].mxu0 %v264
  %v334 = vpop.f32.mrb[0].mxu0
  %v335 = vadd.f32 0.0, %v334
  %v336 = vpop.f32.mrb[0].mxu0
  %337 = vdwg.mxu0
  %v338 = vadd.f32 %v267, %v335
  %v339 = vtanh.pop %v338
  %340 = vst [vmem:[#allocation3 + $0x18] sm:$0xff] %v339
  %s341 = scalar_lea.vmem %s0, 32
  %v342 = vld [vmem:[%s341] sm:$0xff]
  %343 = vmatprep.subr.mxu0 0.0
  %344 = vmatpush1.msra.mxu0 %v26
  %345 = vmatprep.subr.mxu0 0.0
  %346 = vmatpush1.msra.mxu0 %v27
  %347 = vmatprep.subr.mxu0 0.0
  %348 = vmatpush1.msra.mxu0 %v28
  %349 = vmatprep.subr.mxu0 0.0
  %350 = vmatpush1.msra.mxu0 %v29
  %351 = vmatprep.subr.mxu0 0.0
  %352 = vmatpush1.msra.mxu0 %v30
  %353 = vmatprep.subr.mxu0 0.0
  %354 = vmatpush1.msra.mxu0 %v31
  %355 = vmatprep.subr.mxu0 0.0
  %356 = vmatpush1.msra.mxu0 %v32
  %357 = vmatprep.subr.mxu0 0.0
  %358 = vmatpush1.msra.mxu0 %v33
  %359 = vmatprep.subr.mxu0 0.0
  %360 = vmatpush1.msra.mxu0 %v34
  %361 = vmatprep.subr.mxu0 0.0
  %362 = vmatpush1.msra.mxu0 %v35
  %363 = vmatprep.subr.mxu0 0.0
  %364 = vmatpush1.msra.mxu0 %v36
  %365 = vmatprep.subr.mxu0 0.0
  %366 = vmatpush1.msra.mxu0 %v37
  %367 = vmatprep.subr.mxu0 0.0
  %368 = vmatpush1.msra.mxu0 %v38
  %369 = vmatprep.subr.mxu0 0.0
  %370 = vmatpush1.msra.mxu0 %v39
  %371 = vmatprep.subr.mxu0 0.0
  %372 = vmatpush1.msra.mxu0 %v40
  %373 = vmatprep.subr.mxu0 0.0
  %374 = vmatpush1.msra.mxu0 %v41
  %375 = vmatprep.subr.mxu0 0.0
  %376 = vmatpush1.msra.mxu0 0.0
  %377 = vmatprep.subr.mxu0 0.0
  %378 = vmatpush1.msra.mxu0 0.0
  %379 = vmatprep.subr.mxu0 0.0
  %380 = vmatpush1.msra.mxu0 0.0
  %381 = vmatprep.subr.mxu0 0.0
  %382 = vmatpush1.msra.mxu0 0.0
  %383 = vmatprep.subr.mxu0 0.0
  %384 = vmatpush1.msra.mxu0 0.0
  %385 = vmatprep.subr.mxu0 0.0
  %386 = vmatpush1.msra.mxu0 0.0
  %387 = vmatprep.subr.mxu0 0.0
  %388 = vmatpush1.msra.mxu0 0.0
  %389 = vmatprep.subr.mxu0 0.0
  %390 = vmatpush1.msra.mxu0 0.0
  %391 = vmatprep.subr.mxu0 0.0
  %392 = vmatpush1.msra.mxu0 0.0
  %393 = vmatprep.subr.mxu0 0.0
  %394 = vmatpush1.msra.mxu0 0.0
  %395 = vmatprep.subr.mxu0 0.0
  %396 = vmatpush1.msra.mxu0 0.0
  %397 = vmatprep.subr.mxu0 0.0
  %398 = vmatpush1.msra.mxu0 0.0
  %399 = vmatprep.subr.mxu0 0.0
  %400 = vmatpush1.msra.mxu0 0.0
  %401 = vmatprep.subr.mxu0 0.0
  %402 = vmatpush1.msra.mxu0 0.0
  %403 = vmatprep.subr.mxu0 0.0
  %404 = vmatpush1.msra.mxu0 0.0
  %405 = vmatprep.subr.mxu0 0.0
  %406 = vmatpush1.msra.mxu0 0.0
  %407 = vmatprep.mubr.f32.mxu0 0.0
  %408 = vmatmul.mubr.f32.gmra.mrb[0].mxu0 %v339
  %v409 = vpop.f32.mrb[0].mxu0
  %v410 = vadd.f32 0.0, %v409
  %v411 = vpop.f32.mrb[0].mxu0
  %412 = vdwg.mxu0
  %v413 = vadd.f32 %v342, %v410
  %v414 = vtanh.pop %v413
  %415 = vst [vmem:[#allocation3 + $0x20] sm:$0xff] %v414
  %s416 = scalar_lea.vmem %s0, 40
  %v417 = vld [vmem:[%s416] sm:$0xff]
  %418 = vmatprep.subr.mxu0 0.0
  %419 = vmatpush1.msra.mxu0 %v26
  %420 = vmatprep.subr.mxu0 0.0
  %421 = vmatpush1.msra.mxu0 %v27
  %422 = vmatprep.subr.mxu0 0.0
  %423 = vmatpush1.msra.mxu0 %v28
  %424 = vmatprep.subr.mxu0 0.0
  %425 = vmatpush1.msra.mxu0 %v29
  %426 = vmatprep.subr.mxu0 0.0
  %427 = vmatpush1.msra.mxu0 %v30
  %428 = vmatprep.subr.mxu0 0.0
  %429 = vmatpush1.msra.mxu0 %v31
  %430 = vmatprep.subr.mxu0 0.0
  %431 = vmatpush1.msra.mxu0 %v32
  %432 = vmatprep.subr.mxu0 0.0
  %433 = vmatpush1.msra.mxu0 %v33
  %434 = vmatprep.subr.mxu0 0.0
  %435 = vmatpush1.msra.mxu0 %v34
  %436 = vmatprep.subr.mxu0 0.0
  %437 = vmatpush1.msra.mxu0 %v35
  %438 = vmatprep.subr.mxu0 0.0
  %439 = vmatpush1.msra.mxu0 %v36
  %440 = vmatprep.subr.mxu0 0.0
  %441 = vmatpush1.msra.mxu0 %v37
  %442 = vmatprep.subr.mxu0 0.0
  %443 = vmatpush1.msra.mxu0 %v38
  %444 = vmatprep.subr.mxu0 0.0
  %445 = vmatpush1.msra.mxu0 %v39
  %446 = vmatprep.subr.mxu0 0.0
  %447 = vmatpush1.msra.mxu0 %v40
  %448 = vmatprep.subr.mxu0 0.0
  %449 = vmatpush1.msra.mxu0 %v41
  %450 = vmatprep.subr.mxu0 0.0
  %451 = vmatpush1.msra.mxu0 0.0
  %452 = vmatprep.subr.mxu0 0.0
  %453 = vmatpush1.msra.mxu0 0.0
  %454 = vmatprep.subr.mxu0 0.0
  %455 = vmatpush1.msra.mxu0 0.0
  %456 = vmatprep.subr.mxu0 0.0
  %457 = vmatpush1.msra.mxu0 0.0
  %458 = vmatprep.subr.mxu0 0.0
  %459 = vmatpush1.msra.mxu0 0.0
  %460 = vmatprep.subr.mxu0 0.0
  %461 = vmatpush1.msra.mxu0 0.0
  %462 = vmatprep.subr.mxu0 0.0
  %463 = vmatpush1.msra.mxu0 0.0
  %464 = vmatprep.subr.mxu0 0.0
  %465 = vmatpush1.msra.mxu0 0.0
  %466 = vmatprep.subr.mxu0 0.0
  %467 = vmatpush1.msra.mxu0 0.0
  %468 = vmatprep.subr.mxu0 0.0
  %469 = vmatpush1.msra.mxu0 0.0
  %470 = vmatprep.subr.mxu0 0.0
  %471 = vmatpush1.msra.mxu0 0.0
  %472 = vmatprep.subr.mxu0 0.0
  %473 = vmatpush1.msra.mxu0 0.0
  %474 = vmatprep.subr.mxu0 0.0
  %475 = vmatpush1.msra.mxu0 0.0
  %476 = vmatprep.subr.mxu0 0.0
  %477 = vmatpush1.msra.mxu0 0.0
  %478 = vmatprep.subr.mxu0 0.0
  %479 = vmatpush1.msra.mxu0 0.0
  %480 = vmatprep.subr.mxu0 0.0
  %481 = vmatpush1.msra.mxu0 0.0
  %482 = vmatprep.mubr.f32.mxu0 0.0
  %483 = vmatmul.mubr.f32.gmra.mrb[0].mxu0 %v414
  %v484 = vpop.f32.mrb[0].mxu0
  %v485 = vadd.f32 0.0, %v484
  %v486 = vpop.f32.mrb[0].mxu0
  %487 = vdwg.mxu0
  %v488 = vadd.f32 %v417, %v485
  %v489 = vtanh.pop %v488
  %490 = vst [vmem:[#allocation3 + $0x28] sm:$0xff] %v489
  %s491 = scalar_lea.vmem %s0, 48
  %v492 = vld [vmem:[%s491] sm:$0xff]
  %493 = vmatprep.subr.mxu0 0.0
  %494 = vmatpush1.msra.mxu0 %v26
  %495 = vmatprep.subr.mxu0 0.0
  %496 = vmatpush1.msra.mxu0 %v27
  %497 = vmatprep.subr.mxu0 0.0
  %498 = vmatpush1.msra.mxu0 %v28
  %499 = vmatprep.subr.mxu0 0.0
  %500 = vmatpush1.msra.mxu0 %v29
  %501 = vmatprep.subr.mxu0 0.0
  %502 = vmatpush1.msra.mxu0 %v30
  %503 = vmatprep.subr.mxu0 0.0
  %504 = vmatpush1.msra.mxu0 %v31
  %505 = vmatprep.subr.mxu0 0.0
  %506 = vmatpush1.msra.mxu0 %v32
  %507 = vmatprep.subr.mxu0 0.0
  %508 = vmatpush1.msra.mxu0 %v33
  %509 = vmatprep.subr.mxu0 0.0
  %510 = vmatpush1.msra.mxu0 %v34
  %511 = vmatprep.subr.mxu0 0.0
  %512 = vmatpush1.msra.mxu0 %v35
  %513 = vmatprep.subr.mxu0 0.0
  %514 = vmatpush1.msra.mxu0 %v36
  %515 = vmatprep.subr.mxu0 0.0
  %516 = vmatpush1.msra.mxu0 %v37
  %517 = vmatprep.subr.mxu0 0.0
  %518 = vmatpush1.msra.mxu0 %v38
  %519 = vmatprep.subr.mxu0 0.0
  %520 = vmatpush1.msra.mxu0 %v39
  %521 = vmatprep.subr.mxu0 0.0
  %522 = vmatpush1.msra.mxu0 %v40
  %523 = vmatprep.subr.mxu0 0.0
  %524 = vmatpush1.msra.mxu0 %v41
  %525 = vmatprep.subr.mxu0 0.0
  %526 = vmatpush1.msra.mxu0 0.0
  %527 = vmatprep.subr.mxu0 0.0
  %528 = vmatpush1.msra.mxu0 0.0
  %529 = vmatprep.subr.mxu0 0.0
  %530 = vmatpush1.msra.mxu0 0.0
  %531 = vmatprep.subr.mxu0 0.0
  %532 = vmatpush1.msra.mxu0 0.0
  %533 = vmatprep.subr.mxu0 0.0
  %534 = vmatpush1.msra.mxu0 0.0
  %535 = vmatprep.subr.mxu0 0.0
  %536 = vmatpush1.msra.mxu0 0.0
  %537 = vmatprep.subr.mxu0 0.0
  %538 = vmatpush1.msra.mxu0 0.0
  %539 = vmatprep.subr.mxu0 0.0
  %540 = vmatpush1.msra.mxu0 0.0
  %541 = vmatprep.subr.mxu0 0.0
  %542 = vmatpush1.msra.mxu0 0.0
  %543 = vmatprep.subr.mxu0 0.0
  %544 = vmatpush1.msra.mxu0 0.0
  %545 = vmatprep.subr.mxu0 0.0
  %546 = vmatpush1.msra.mxu0 0.0
  %547 = vmatprep.subr.mxu0 0.0
  %548 = vmatpush1.msra.mxu0 0.0
  %549 = vmatprep.subr.mxu0 0.0
  %550 = vmatpush1.msra.mxu0 0.0
  %551 = vmatprep.subr.mxu0 0.0
  %552 = vmatpush1.msra.mxu0 0.0
  %553 = vmatprep.subr.mxu0 0.0
  %554 = vmatpush1.msra.mxu0 0.0
  %555 = vmatprep.subr.mxu0 0.0
  %556 = vmatpush1.msra.mxu0 0.0
  %557 = vmatprep.mubr.f32.mxu0 0.0
  %558 = vmatmul.mubr.f32.gmra.mrb[0].mxu0 %v489
  %v559 = vpop.f32.mrb[0].mxu0
  %v560 = vadd.f32 0.0, %v559
  %v561 = vpop.f32.mrb[0].mxu0
  %562 = vdwg.mxu0
  %v563 = vadd.f32 %v492, %v560
  %v564 = vtanh.pop %v563
  %565 = vst [vmem:[#allocation3 + $0x30] sm:$0xff] %v564
  %s566 = scalar_lea.vmem %s0, 56
  %v567 = vld [vmem:[%s566] sm:$0xff]
  %568 = vmatprep.subr.mxu0 0.0
  %569 = vmatpush1.msra.mxu0 %v26
  %570 = vmatprep.subr.mxu0 0.0
  %571 = vmatpush1.msra.mxu0 %v27
  %572 = vmatprep.subr.mxu0 0.0
  %573 = vmatpush1.msra.mxu0 %v28
  %574 = vmatprep.subr.mxu0 0.0
  %575 = vmatpush1.msra.mxu0 %v29
  %576 = vmatprep.subr.mxu0 0.0
  %577 = vmatpush1.msra.mxu0 %v30
  %578 = vmatprep.subr.mxu0 0.0
  %579 = vmatpush1.msra.mxu0 %v31
  %580 = vmatprep.subr.mxu0 0.0
  %581 = vmatpush1.msra.mxu0 %v32
  %582 = vmatprep.subr.mxu0 0.0
  %583 = vmatpush1.msra.mxu0 %v33
  %584 = vmatprep.subr.mxu0 0.0
  %585 = vmatpush1.msra.mxu0 %v34
  %586 = vmatprep.subr.mxu0 0.0
  %587 = vmatpush1.msra.mxu0 %v35
  %588 = vmatprep.subr.mxu0 0.0
  %589 = vmatpush1.msra.mxu0 %v36
  %590 = vmatprep.subr.mxu0 0.0
  %591 = vmatpush1.msra.mxu0 %v37
  %592 = vmatprep.subr.mxu0 0.0
  %593 = vmatpush1.msra.mxu0 %v38
  %594 = vmatprep.subr.mxu0 0.0
  %595 = vmatpush1.msra.mxu0 %v39
  %596 = vmatprep.subr.mxu0 0.0
  %597 = vmatpush1.msra.mxu0 %v40
  %598 = vmatprep.subr.mxu0 0.0
  %599 = vmatpush1.msra.mxu0 %v41
  %600 = vmatprep.subr.mxu0 0.0
  %601 = vmatpush1.msra.mxu0 0.0
  %602 = vmatprep.subr.mxu0 0.0
  %603 = vmatpush1.msra.mxu0 0.0
  %604 = vmatprep.subr.mxu0 0.0
  %605 = vmatpush1.msra.mxu0 0.0
  %606 = vmatprep.subr.mxu0 0.0
  %607 = vmatpush1.msra.mxu0 0.0
  %608 = vmatprep.subr.mxu0 0.0
  %609 = vmatpush1.msra.mxu0 0.0
  %610 = vmatprep.subr.mxu0 0.0
  %611 = vmatpush1.msra.mxu0 0.0
  %612 = vmatprep.subr.mxu0 0.0
  %613 = vmatpush1.msra.mxu0 0.0
  %614 = vmatprep.subr.mxu0 0.0
  %615 = vmatpush1.msra.mxu0 0.0
  %616 = vmatprep.subr.mxu0 0.0
  %617 = vmatpush1.msra.mxu0 0.0
  %618 = vmatprep.subr.mxu0 0.0
  %619 = vmatpush1.msra.mxu0 0.0
  %620 = vmatprep.subr.mxu0 0.0
  %621 = vmatpush1.msra.mxu0 0.0
  %622 = vmatprep.subr.mxu0 0.0
  %623 = vmatpush1.msra.mxu0 0.0
  %624 = vmatprep.subr.mxu0 0.0
  %625 = vmatpush1.msra.mxu0 0.0
  %626 = vmatprep.subr.mxu0 0.0
  %627 = vmatpush1.msra.mxu0 0.0
  %628 = vmatprep.subr.mxu0 0.0
  %629 = vmatpush1.msra.mxu0 0.0
  %630 = vmatprep.subr.mxu0 0.0
  %631 = vmatpush1.msra.mxu0 0.0
  %632 = vmatprep.mubr.f32.mxu0 0.0
  %633 = vmatmul.mubr.f32.gmra.mrb[0].mxu0 %v564
  %v634 = vpop.f32.mrb[0].mxu0
  %v635 = vadd.f32 0.0, %v634
  %v636 = vpop.f32.mrb[0].mxu0
  %637 = vdwg.mxu0
  %v638 = vadd.f32 %v567, %v635
  %v639 = vtanh.pop %v638
  %640 = vst [vmem:[#allocation3 + $0x38] sm:$0xff] %v639
  %v641 = vld [vmem:[%s5] sm:$0xff]
  %v642 = vld [vmem:[%s5 + $0x8] sm:$0xff]
  %v643 = vld [vmem:[%s5 + $0x10] sm:$0xff]
  %v644 = vld [vmem:[%s5 + $0x18] sm:$0xff]
  %v645 = vld [vmem:[%s5 + $0x20] sm:$0xff]
  %v646 = vld [vmem:[%s5 + $0x28] sm:$0xff]
  %v647 = vld [vmem:[%s5 + $0x30] sm:$0xff]
  %v648 = vld [vmem:[%s5 + $0x38] sm:$0xff]
  %v649 = vld [vmem:[%s5 + $0x40] sm:$0xff]
  %v650 = vld [vmem:[%s5 + $0x48] sm:$0xff]
  %v651 = vld [vmem:[%s5 + $0x50] sm:$0xff]
  %v652 = vld [vmem:[%s5 + $0x58] sm:$0xff]
  %v653 = vld [vmem:[%s5 + $0x60] sm:$0xff]
  %v654 = vld [vmem:[%s5 + $0x68] sm:$0xff]
  %v655 = vld [vmem:[%s5 + $0x70] sm:$0xff]
  %v656 = vld [vmem:[%s5 + $0x78] sm:$0xff]
  %v657 = vld [vmem:[%s6] sm:$0x1]
  %v659 = vlaneseq
  %v660 = vshrl.u32 %v659, 7
  %v661 = vsub.s32 0, %v660
  %v662 = vrot.slane %v657, %v661
  %664 = vmatprep.subr.mxu0 0.0
  %665 = vmatpush1.msra.mxu0 %v641
  %666 = vmatprep.subr.mxu0 0.0
  %667 = vmatpush1.msra.mxu0 %v642
  %668 = vmatprep.subr.mxu0 0.0
  %669 = vmatpush1.msra.mxu0 %v643
  %670 = vmatprep.subr.mxu0 0.0
  %671 = vmatpush1.msra.mxu0 %v644
  %672 = vmatprep.subr.mxu0 0.0
  %673 = vmatpush1.msra.mxu0 %v645
  %674 = vmatprep.subr.mxu0 0.0
  %675 = vmatpush1.msra.mxu0 %v646
  %676 = vmatprep.subr.mxu0 0.0
  %677 = vmatpush1.msra.mxu0 %v647
  %678 = vmatprep.subr.mxu0 0.0
  %679 = vmatpush1.msra.mxu0 %v648
  %680 = vmatprep.subr.mxu0 0.0
  %681 = vmatpush1.msra.mxu0 %v649
  %682 = vmatprep.subr.mxu0 0.0
  %683 = vmatpush1.msra.mxu0 %v650
  %684 = vmatprep.subr.mxu0 0.0
  %685 = vmatpush1.msra.mxu0 %v651
  %686 = vmatprep.subr.mxu0 0.0
  %687 = vmatpush1.msra.mxu0 %v652
  %688 = vmatprep.subr.mxu0 0.0
  %689 = vmatpush1.msra.mxu0 %v653
  %690 = vmatprep.subr.mxu0 0.0
  %691 = vmatpush1.msra.mxu0 %v654
  %692 = vmatprep.subr.mxu0 0.0
  %693 = vmatpush1.msra.mxu0 %v655
  %694 = vmatprep.subr.mxu0 0.0
  %695 = vmatpush1.msra.mxu0 %v656
  %696 = vmatprep.subr.mxu0 0.0
  %697 = vmatpush1.msra.mxu0 0.0
  %698 = vmatprep.subr.mxu0 0.0
  %699 = vmatpush1.msra.mxu0 0.0
  %700 = vmatprep.subr.mxu0 0.0
  %701 = vmatpush1.msra.mxu0 0.0
  %702 = vmatprep.subr.mxu0 0.0
  %703 = vmatpush1.msra.mxu0 0.0
  %704 = vmatprep.subr.mxu0 0.0
  %705 = vmatpush1.msra.mxu0 0.0
  %706 = vmatprep.subr.mxu0 0.0
  %707 = vmatpush1.msra.mxu0 0.0
  %708 = vmatprep.subr.mxu0 0.0
  %709 = vmatpush1.msra.mxu0 0.0
  %710 = vmatprep.subr.mxu0 0.0
  %711 = vmatpush1.msra.mxu0 0.0
  %712 = vmatprep.subr.mxu0 0.0
  %713 = vmatpush1.msra.mxu0 0.0
  %714 = vmatprep.subr.mxu0 0.0
  %715 = vmatpush1.msra.mxu0 0.0
  %716 = vmatprep.subr.mxu0 0.0
  %717 = vmatpush1.msra.mxu0 0.0
  %718 = vmatprep.subr.mxu0 0.0
  %719 = vmatpush1.msra.mxu0 0.0
  %720 = vmatprep.subr.mxu0 0.0
  %721 = vmatpush1.msra.mxu0 0.0
  %722 = vmatprep.subr.mxu0 0.0
  %723 = vmatpush1.msra.mxu0 0.0
  %724 = vmatprep.subr.mxu0 0.0
  %725 = vmatpush1.msra.mxu0 0.0
  %726 = vmatprep.subr.mxu0 0.0
  %727 = vmatpush1.msra.mxu0 0.0
  %728 = vmatprep.mubr.f32.mxu0 0.0
  %729 = vmatmul.mubr.f32.gmra.mrb[0].mxu0 %v639
  %v730 = vpop.f32.mrb[0].mxu0
  %v731 = vadd.f32 %v662, %v730
  %v732 = vpop.f32.mrb[0].mxu0
  %733 = vdwg.mxu0
  %734 = vst [vmem:[%s7] sm:$0xff] %v731
  %v735 = vld [vmem:[#allocation3] sm:$0xff]
  %v736 = vld [vmem:[#allocation3 + $0x8] sm:$0xff]
  %v737 = vld [vmem:[#allocation3 + $0x10] sm:$0xff]
  %v738 = vld [vmem:[#allocation3 + $0x18] sm:$0xff]
  %v739 = vld [vmem:[#allocation3 + $0x20] sm:$0xff]
  %v740 = vld [vmem:[#allocation3 + $0x28] sm:$0xff]
  %v741 = vld [vmem:[#allocation3 + $0x30] sm:$0xff]
  %v742 = vld [vmem:[#allocation3 + $0x38] sm:$0xff]
  %v743 = vld [vmem:[%s2] sm:$0xff]
  %v744 = vld [vmem:[%s2 + $0x8] sm:$0xff]
  %v745 = vld [vmem:[%s2 + $0x10] sm:$0xff]
  %v746 = vld [vmem:[%s2 + $0x18] sm:$0xff]
  %v747 = vld [vmem:[%s2 + $0x20] sm:$0xff]
  %v748 = vld [vmem:[%s2 + $0x28] sm:$0xff]
  %v749 = vld [vmem:[%s2 + $0x30] sm:$0xff]
  %v750 = vld [vmem:[%s2 + $0x38] sm:$0xff]
  %v751 = vld [vmem:[%s2 + $0x40] sm:$0xff]
  %v752 = vld [vmem:[%s2 + $0x48] sm:$0xff]
  %v753 = vld [vmem:[%s2 + $0x50] sm:$0xff]
  %v754 = vld [vmem:[%s2 + $0x58] sm:$0xff]
  %v755 = vld [vmem:[%s2 + $0x60] sm:$0xff]
  %v756 = vld [vmem:[%s2 + $0x68] sm:$0xff]
  %v757 = vld [vmem:[%s2 + $0x70] sm:$0xff]
  %v758 = vld [vmem:[%s2 + $0x78] sm:$0xff]
  %v759 = vld [vmem:[%s4] sm:$0x1]
  %v761 = vlaneseq
  %v762 = vshrl.u32 %v761, 7
  %v763 = vsub.s32 0, %v762
  %v764 = vrot.slane %v759, %v763
  %766 = vmatprep.subr.mxu0 0.0
  %767 = vmatpush1.msra.mxu0 %v743
  %768 = vmatprep.subr.mxu0 0.0
  %769 = vmatpush1.msra.mxu0 %v744
  %770 = vmatprep.subr.mxu0 0.0
  %771 = vmatpush1.msra.mxu0 %v745
  %772 = vmatprep.subr.mxu0 0.0
  %773 = vmatpush1.msra.mxu0 %v746
  %774 = vmatprep.subr.mxu0 0.0
  %775 = vmatpush1.msra.mxu0 %v747
  %776 = vmatprep.subr.mxu0 0.0
  %777 = vmatpush1.msra.mxu0 %v748
  %778 = vmatprep.subr.mxu0 0.0
  %779 = vmatpush1.msra.mxu0 %v749
  %780 = vmatprep.subr.mxu0 0.0
  %781 = vmatpush1.msra.mxu0 %v750
  %782 = vmatprep.subr.mxu0 0.0
  %783 = vmatpush1.msra.mxu0 %v751
  %784 = vmatprep.subr.mxu0 0.0
  %785 = vmatpush1.msra.mxu0 %v752
  %786 = vmatprep.subr.mxu0 0.0
  %787 = vmatpush1.msra.mxu0 %v753
  %788 = vmatprep.subr.mxu0 0.0
  %789 = vmatpush1.msra.mxu0 %v754
  %790 = vmatprep.subr.mxu0 0.0
  %791 = vmatpush1.msra.mxu0 %v755
  %792 = vmatprep.subr.mxu0 0.0
  %793 = vmatpush1.msra.mxu0 %v756
  %794 = vmatprep.subr.mxu0 0.0
  %795 = vmatpush1.msra.mxu0 %v757
  %796 = vmatprep.subr.mxu0 0.0
  %797 = vmatpush1.msra.mxu0 %v758
  %798 = vmatprep.subr.mxu0 0.0
  %799 = vmatpush1.msra.mxu0 0.0
  %800 = vmatprep.subr.mxu0 0.0
  %801 = vmatpush1.msra.mxu0 0.0
  %802 = vmatprep.subr.mxu0 0.0
  %803 = vmatpush1.msra.mxu0 0.0
  %804 = vmatprep.subr.mxu0 0.0
  %805 = vmatpush1.msra.mxu0 0.0
  %806 = vmatprep.subr.mxu0 0.0
  %807 = vmatpush1.msra.mxu0 0.0
  %808 = vmatprep.subr.mxu0 0.0
  %809 = vmatpush1.msra.mxu0 0.0
  %810 = vmatprep.subr.mxu0 0.0
  %811 = vmatpush1.msra.mxu0 0.0
  %812 = vmatprep.subr.mxu0 0.0
  %813 = vmatpush1.msra.mxu0 0.0
  %814 = vmatprep.subr.mxu0 0.0
  %815 = vmatpush1.msra.mxu0 0.0
  %816 = vmatprep.subr.mxu0 0.0
  %817 = vmatpush1.msra.mxu0 0.0
  %818 = vmatprep.subr.mxu0 0.0
  %819 = vmatpush1.msra.mxu0 0.0
  %820 = vmatprep.subr.mxu0 0.0
  %821 = vmatpush1.msra.mxu0 0.0
  %822 = vmatprep.subr.mxu0 0.0
  %823 = vmatpush1.msra.mxu0 0.0
  %824 = vmatprep.subr.mxu0 0.0
  %825 = vmatpush1.msra.mxu0 0.0
  %826 = vmatprep.subr.mxu0 0.0
  %827 = vmatpush1.msra.mxu0 0.0
  %828 = vmatprep.subr.mxu0 0.0
  %829 = vmatpush1.msra.mxu0 0.0
  %830 = vmatprep.mubr.f32.mxu0 0.0
  %831 = vmatmul.mubr.f32.gmra.mrb[0].mxu0 %v735
  %v832 = vpop.f32.mrb[0].mxu0
  %v833 = vadd.f32 %v764, %v832
  %v834 = vpop.f32.mrb[0].mxu0
  %835 = vmatprep.mubr.f32.mxu0 0.0
  %836 = vmatmul.mubr.f32.gmra.mrb[0].mxu0 %v736
  %v837 = vpop.f32.mrb[0].mxu0
  %v838 = vadd.f32 %v764, %v837
  %v839 = vpop.f32.mrb[0].mxu0
  %840 = vmatprep.mubr.f32.mxu0 0.0
  %841 = vmatmul.mubr.f32.gmra.mrb[0].mxu0 %v737
  %v842 = vpop.f32.mrb[0].mxu0
  %v843 = vadd.f32 %v764, %v842
  %v844 = vpop.f32.mrb[0].mxu0
  %845 = vmatprep.mubr.f32.mxu0 0.0
  %846 = vmatmul.mubr.f32.gmra.mrb[0].mxu0 %v738
  %v847 = vpop.f32.mrb[0].mxu0
  %v848 = vadd.f32 %v764, %v847
  %v849 = vpop.f32.mrb[0].mxu0
  %850 = vmatprep.mubr.f32.mxu0 0.0
  %851 = vmatmul.mubr.f32.gmra.mrb[0].mxu0 %v739
  %v852 = vpop.f32.mrb[0].mxu0
  %v853 = vadd.f32 %v764, %v852
  %v854 = vpop.f32.mrb[0].mxu0
  %855 = vmatprep.mubr.f32.mxu0 0.0
  %856 = vmatmul.mubr.f32.gmra.mrb[0].mxu0 %v740
  %v857 = vpop.f32.mrb[0].mxu0
  %v858 = vadd.f32 %v764, %v857
  %v859 = vpop.f32.mrb[0].mxu0
  %860 = vmatprep.mubr.f32.mxu0 0.0
  %861 = vmatmul.mubr.f32.gmra.mrb[0].mxu0 %v741
  %v862 = vpop.f32.mrb[0].mxu0
  %v863 = vadd.f32 %v764, %v862
  %v864 = vpop.f32.mrb[0].mxu0
  %865 = vmatprep.mubr.f32.mxu0 0.0
  %866 = vmatmul.mubr.f32.gmra.mrb[0].mxu0 %v742
  %v867 = vpop.f32.mrb[0].mxu0
  %v868 = vadd.f32 %v764, %v867
  %v869 = vpop.f32.mrb[0].mxu0
  %870 = vdwg.mxu0
  %871 = vst [vmem:[#allocation2] sm:$0xff] %v833
  %872 = vst [vmem:[#allocation2 + $0x8] sm:$0xff] %v838
  %873 = vst [vmem:[#allocation2 + $0x10] sm:$0xff] %v843
  %874 = vst [vmem:[#allocation2 + $0x18] sm:$0xff] %v848
  %875 = vst [vmem:[#allocation2 + $0x20] sm:$0xff] %v853
  %876 = vst [vmem:[#allocation2 + $0x28] sm:$0xff] %v858
  %877 = vst [vmem:[#allocation2 + $0x30] sm:$0xff] %v863
  %878 = vst [vmem:[#allocation2 + $0x38] sm:$0xff] %v868
  %v879 = vld [vmem:[%s3] sm:$0xff]
  %v880 = vld [vmem:[%s3 + $0x8] sm:$0xff]
  %v881 = vld [vmem:[%s3 + $0x10] sm:$0xff]
  %v882 = vld [vmem:[%s3 + $0x18] sm:$0xff]
  %v883 = vld [vmem:[%s3 + $0x20] sm:$0xff]
  %v884 = vld [vmem:[%s3 + $0x28] sm:$0xff]
  %v885 = vld [vmem:[%s3 + $0x30] sm:$0xff]
  %v886 = vld [vmem:[%s3 + $0x38] sm:$0xff]
  %v887 = vld [vmem:[%s3 + $0x40] sm:$0xff]
  %v888 = vld [vmem:[%s3 + $0x48] sm:$0xff]
  %v889 = vld [vmem:[%s3 + $0x50] sm:$0xff]
  %v890 = vld [vmem:[%s3 + $0x58] sm:$0xff]
  %v891 = vld [vmem:[%s3 + $0x60] sm:$0xff]
  %v892 = vld [vmem:[%s3 + $0x68] sm:$0xff]
  %v893 = vld [vmem:[%s3 + $0x70] sm:$0xff]
  %v894 = vld [vmem:[%s3 + $0x78] sm:$0xff]
  %v895 = vld [vmem:[#allocation2] sm:$0xff]
  %896 = vmatprep.subr.mxu0 0.0
  %897 = vmatpush1.msra.mxu0 %v879
  %898 = vmatprep.subr.mxu0 0.0
  %899 = vmatpush1.msra.mxu0 %v880
  %900 = vmatprep.subr.mxu0 0.0
  %901 = vmatpush1.msra.mxu0 %v881
  %902 = vmatprep.subr.mxu0 0.0
  %903 = vmatpush1.msra.mxu0 %v882
  %904 = vmatprep.subr.mxu0 0.0
  %905 = vmatpush1.msra.mxu0 %v883
  %906 = vmatprep.subr.mxu0 0.0
  %907 = vmatpush1.msra.mxu0 %v884
  %908 = vmatprep.subr.mxu0 0.0
  %909 = vmatpush1.msra.mxu0 %v885
  %910 = vmatprep.subr.mxu0 0.0
  %911 = vmatpush1.msra.mxu0 %v886
  %912 = vmatprep.subr.mxu0 0.0
  %913 = vmatpush1.msra.mxu0 %v887
  %914 = vmatprep.subr.mxu0 0.0
  %915 = vmatpush1.msra.mxu0 %v888
  %916 = vmatprep.subr.mxu0 0.0
  %917 = vmatpush1.msra.mxu0 %v889
  %918 = vmatprep.subr.mxu0 0.0
  %919 = vmatpush1.msra.mxu0 %v890
  %920 = vmatprep.subr.mxu0 0.0
  %921 = vmatpush1.msra.mxu0 %v891
  %922 = vmatprep.subr.mxu0 0.0
  %923 = vmatpush1.msra.mxu0 %v892
  %924 = vmatprep.subr.mxu0 0.0
  %925 = vmatpush1.msra.mxu0 %v893
  %926 = vmatprep.subr.mxu0 0.0
  %927 = vmatpush1.msra.mxu0 %v894
  %928 = vmatprep.subr.mxu0 0.0
  %929 = vmatpush1.msra.mxu0 0.0
  %930 = vmatprep.subr.mxu0 0.0
  %931 = vmatpush1.msra.mxu0 0.0
  %932 = vmatprep.subr.mxu0 0.0
  %933 = vmatpush1.msra.mxu0 0.0
  %934 = vmatprep.subr.mxu0 0.0
  %935 = vmatpush1.msra.mxu0 0.0
  %936 = vmatprep.subr.mxu0 0.0
  %937 = vmatpush1.msra.mxu0 0.0
  %938 = vmatprep.subr.mxu0 0.0
  %939 = vmatpush1.msra.mxu0 0.0
  %940 = vmatprep.subr.mxu0 0.0
  %941 = vmatpush1.msra.mxu0 0.0
  %942 = vmatprep.subr.mxu0 0.0
  %943 = vmatpush1.msra.mxu0 0.0
  %944 = vmatprep.subr.mxu0 0.0
  %945 = vmatpush1.msra.mxu0 0.0
  %946 = vmatprep.subr.mxu0 0.0
  %947 = vmatpush1.msra.mxu0 0.0
  %948 = vmatprep.subr.mxu0 0.0
  %949 = vmatpush1.msra.mxu0 0.0
  %950 = vmatprep.subr.mxu0 0.0
  %951 = vmatpush1.msra.mxu0 0.0
  %952 = vmatprep.subr.mxu0 0.0
  %953 = vmatpush1.msra.mxu0 0.0
  %954 = vmatprep.subr.mxu0 0.0
  %955 = vmatpush1.msra.mxu0 0.0
  %956 = vmatprep.subr.mxu0 0.0
  %957 = vmatpush1.msra.mxu0 0.0
  %958 = vmatprep.subr.mxu0 0.0
  %959 = vmatpush1.msra.mxu0 0.0
  %960 = vmatprep.mubr.f32.mxu0 0.0
  %961 = vmatmul.mubr.f32.gmra.mrb[0].mxu0 0.0
  %v962 = vpop.f32.mrb[0].mxu0
  %v963 = vadd.f32 0.0, %v962
  %v964 = vpop.f32.mrb[0].mxu0
  %965 = vdwg.mxu0
  %v966 = vadd.f32 %v895, %v963
  %v967 = vtanh.pop %v966
  %v968 = vld [vmem:[#allocation2 + $0x8] sm:$0xff]
  %969 = vmatprep.subr.mxu0 0.0
  %970 = vmatpush1.msra.mxu0 %v879
  %971 = vmatprep.subr.mxu0 0.0
  %972 = vmatpush1.msra.mxu0 %v880
  %973 = vmatprep.subr.mxu0 0.0
  %974 = vmatpush1.msra.mxu0 %v881
  %975 = vmatprep.subr.mxu0 0.0
  %976 = vmatpush1.msra.mxu0 %v882
  %977 = vmatprep.subr.mxu0 0.0
  %978 = vmatpush1.msra.mxu0 %v883
  %979 = vmatprep.subr.mxu0 0.0
  %980 = vmatpush1.msra.mxu0 %v884
  %981 = vmatprep.subr.mxu0 0.0
  %982 = vmatpush1.msra.mxu0 %v885
  %983 = vmatprep.subr.mxu0 0.0
  %984 = vmatpush1.msra.mxu0 %v886
  %985 = vmatprep.subr.mxu0 0.0
  %986 = vmatpush1.msra.mxu0 %v887
  %987 = vmatprep.subr.mxu0 0.0
  %988 = vmatpush1.msra.mxu0 %v888
  %989 = vmatprep.subr.mxu0 0.0
  %990 = vmatpush1.msra.mxu0 %v889
  %991 = vmatprep.subr.mxu0 0.0
  %992 = vmatpush1.msra.mxu0 %v890
  %993 = vmatprep.subr.mxu0 0.0
  %994 = vmatpush1.msra.mxu0 %v891
  %995 = vmatprep.subr.mxu0 0.0
  %996 = vmatpush1.msra.mxu0 %v892
  %997 = vmatprep.subr.mxu0 0.0
  %998 = vmatpush1.msra.mxu0 %v893
  %999 = vmatprep.subr.mxu0 0.0
  %1000 = vmatpush1.msra.mxu0 %v894
  %1001 = vmatprep.subr.mxu0 0.0
  %1002 = vmatpush1.msra.mxu0 0.0
  %1003 = vmatprep.subr.mxu0 0.0
  %1004 = vmatpush1.msra.mxu0 0.0
  %1005 = vmatprep.subr.mxu0 0.0
  %1006 = vmatpush1.msra.mxu0 0.0
  %1007 = vmatprep.subr.mxu0 0.0
  %1008 = vmatpush1.msra.mxu0 0.0
  %1009 = vmatprep.subr.mxu0 0.0
  %1010 = vmatpush1.msra.mxu0 0.0
  %1011 = vmatprep.subr.mxu0 0.0
  %1012 = vmatpush1.msra.mxu0 0.0
  %1013 = vmatprep.subr.mxu0 0.0
  %1014 = vmatpush1.msra.mxu0 0.0
  %1015 = vmatprep.subr.mxu0 0.0
  %1016 = vmatpush1.msra.mxu0 0.0
  %1017 = vmatprep.subr.mxu0 0.0
  %1018 = vmatpush1.msra.mxu0 0.0
  %1019 = vmatprep.subr.mxu0 0.0
  %1020 = vmatpush1.msra.mxu0 0.0
  %1021 = vmatprep.subr.mxu0 0.0
  %1022 = vmatpush1.msra.mxu0 0.0
  %1023 = vmatprep.subr.mxu0 0.0
  %1024 = vmatpush1.msra.mxu0 0.0
  %1025 = vmatprep.subr.mxu0 0.0
  %1026 = vmatpush1.msra.mxu0 0.0
  %1027 = vmatprep.subr.mxu0 0.0
  %1028 = vmatpush1.msra.mxu0 0.0
  %1029 = vmatprep.subr.mxu0 0.0
  %1030 = vmatpush1.msra.mxu0 0.0
  %1031 = vmatprep.subr.mxu0 0.0
  %1032 = vmatpush1.msra.mxu0 0.0
  %1033 = vmatprep.mubr.f32.mxu0 0.0
  %1034 = vmatmul.mubr.f32.gmra.mrb[0].mxu0 %v967
  %v1035 = vpop.f32.mrb[0].mxu0
  %v1036 = vadd.f32 0.0, %v1035
  %v1037 = vpop.f32.mrb[0].mxu0
  %1038 = vdwg.mxu0
  %v1039 = vadd.f32 %v968, %v1036
  %v1040 = vtanh.pop %v1039
  %v1041 = vld [vmem:[#allocation2 + $0x10] sm:$0xff]
  %1042 = vmatprep.subr.mxu0 0.0
  %1043 = vmatpush1.msra.mxu0 %v879
  %1044 = vmatprep.subr.mxu0 0.0
  %1045 = vmatpush1.msra.mxu0 %v880
  %1046 = vmatprep.subr.mxu0 0.0
  %1047 = vmatpush1.msra.mxu0 %v881
  %1048 = vmatprep.subr.mxu0 0.0
  %1049 = vmatpush1.msra.mxu0 %v882
  %1050 = vmatprep.subr.mxu0 0.0
  %1051 = vmatpush1.msra.mxu0 %v883
  %1052 = vmatprep.subr.mxu0 0.0
  %1053 = vmatpush1.msra.mxu0 %v884
  %1054 = vmatprep.subr.mxu0 0.0
  %1055 = vmatpush1.msra.mxu0 %v885
  %1056 = vmatprep.subr.mxu0 0.0
  %1057 = vmatpush1.msra.mxu0 %v886
  %1058 = vmatprep.subr.mxu0 0.0
  %1059 = vmatpush1.msra.mxu0 %v887
  %1060 = vmatprep.subr.mxu0 0.0
  %1061 = vmatpush1.msra.mxu0 %v888
  %1062 = vmatprep.subr.mxu0 0.0
  %1063 = vmatpush1.msra.mxu0 %v889
  %1064 = vmatprep.subr.mxu0 0.0
  %1065 = vmatpush1.msra.mxu0 %v890
  %1066 = vmatprep.subr.mxu0 0.0
  %1067 = vmatpush1.msra.mxu0 %v891
  %1068 = vmatprep.subr.mxu0 0.0
  %1069 = vmatpush1.msra.mxu0 %v892
  %1070 = vmatprep.subr.mxu0 0.0
  %1071 = vmatpush1.msra.mxu0 %v893
  %1072 = vmatprep.subr.mxu0 0.0
  %1073 = vmatpush1.msra.mxu0 %v894
  %1074 = vmatprep.subr.mxu0 0.0
  %1075 = vmatpush1.msra.mxu0 0.0
  %1076 = vmatprep.subr.mxu0 0.0
  %1077 = vmatpush1.msra.mxu0 0.0
  %1078 = vmatprep.subr.mxu0 0.0
  %1079 = vmatpush1.msra.mxu0 0.0
  %1080 = vmatprep.subr.mxu0 0.0
  %1081 = vmatpush1.msra.mxu0 0.0
  %1082 = vmatprep.subr.mxu0 0.0
  %1083 = vmatpush1.msra.mxu0 0.0
  %1084 = vmatprep.subr.mxu0 0.0
  %1085 = vmatpush1.msra.mxu0 0.0
  %1086 = vmatprep.subr.mxu0 0.0
  %1087 = vmatpush1.msra.mxu0 0.0
  %1088 = vmatprep.subr.mxu0 0.0
  %1089 = vmatpush1.msra.mxu0 0.0
  %1090 = vmatprep.subr.mxu0 0.0
  %1091 = vmatpush1.msra.mxu0 0.0
  %1092 = vmatprep.subr.mxu0 0.0
  %1093 = vmatpush1.msra.mxu0 0.0
  %1094 = vmatprep.subr.mxu0 0.0
  %1095 = vmatpush1.msra.mxu0 0.0
  %1096 = vmatprep.subr.mxu0 0.0
  %1097 = vmatpush1.msra.mxu0 0.0
  %1098 = vmatprep.subr.mxu0 0.0
  %1099 = vmatpush1.msra.mxu0 0.0
  %1100 = vmatprep.subr.mxu0 0.0
  %1101 = vmatpush1.msra.mxu0 0.0
  %1102 = vmatprep.subr.mxu0 0.0
  %1103 = vmatpush1.msra.mxu0 0.0
  %1104 = vmatprep.subr.mxu0 0.0
  %1105 = vmatpush1.msra.mxu0 0.0
  %1106 = vmatprep.mubr.f32.mxu0 0.0
  %1107 = vmatmul.mubr.f32.gmra.mrb[0].mxu0 %v1040
  %v1108 = vpop.f32.mrb[0].mxu0
  %v1109 = vadd.f32 0.0, %v1108
  %v1110 = vpop.f32.mrb[0].mxu0
  %1111 = vdwg.mxu0
  %v1112 = vadd.f32 %v1041, %v1109
  %v1113 = vtanh.pop %v1112
  %v1114 = vld [vmem:[#allocation2 + $0x18] sm:$0xff]
  %1115 = vmatprep.subr.mxu0 0.0
  %1116 = vmatpush1.msra.mxu0 %v879
  %1117 = vmatprep.subr.mxu0 0.0
  %1118 = vmatpush1.msra.mxu0 %v880
  %1119 = vmatprep.subr.mxu0 0.0
  %1120 = vmatpush1.msra.mxu0 %v881
  %1121 = vmatprep.subr.mxu0 0.0
  %1122 = vmatpush1.msra.mxu0 %v882
  %1123 = vmatprep.subr.mxu0 0.0
  %1124 = vmatpush1.msra.mxu0 %v883
  %1125 = vmatprep.subr.mxu0 0.0
  %1126 = vmatpush1.msra.mxu0 %v884
  %1127 = vmatprep.subr.mxu0 0.0
  %1128 = vmatpush1.msra.mxu0 %v885
  %1129 = vmatprep.subr.mxu0 0.0
  %1130 = vmatpush1.msra.mxu0 %v886
  %1131 = vmatprep.subr.mxu0 0.0
  %1132 = vmatpush1.msra.mxu0 %v887
  %1133 = vmatprep.subr.mxu0 0.0
  %1134 = vmatpush1.msra.mxu0 %v888
  %1135 = vmatprep.subr.mxu0 0.0
  %1136 = vmatpush1.msra.mxu0 %v889
  %1137 = vmatprep.subr.mxu0 0.0
  %1138 = vmatpush1.msra.mxu0 %v890
  %1139 = vmatprep.subr.mxu0 0.0
  %1140 = vmatpush1.msra.mxu0 %v891
  %1141 = vmatprep.subr.mxu0 0.0
  %1142 = vmatpush1.msra.mxu0 %v892
  %1143 = vmatprep.subr.mxu0 0.0
  %1144 = vmatpush1.msra.mxu0 %v893
  %1145 = vmatprep.subr.mxu0 0.0
  %1146 = vmatpush1.msra.mxu0 %v894
  %1147 = vmatprep.subr.mxu0 0.0
  %1148 = vmatpush1.msra.mxu0 0.0
  %1149 = vmatprep.subr.mxu0 0.0
  %1150 = vmatpush1.msra.mxu0 0.0
  %1151 = vmatprep.subr.mxu0 0.0
  %1152 = vmatpush1.msra.mxu0 0.0
  %1153 = vmatprep.subr.mxu0 0.0
  %1154 = vmatpush1.msra.mxu0 0.0
  %1155 = vmatprep.subr.mxu0 0.0
  %1156 = vmatpush1.msra.mxu0 0.0
  %1157 = vmatprep.subr.mxu0 0.0
  %1158 = vmatpush1.msra.mxu0 0.0
  %1159 = vmatprep.subr.mxu0 0.0
  %1160 = vmatpush1.msra.mxu0 0.0
  %1161 = vmatprep.subr.mxu0 0.0
  %1162 = vmatpush1.msra.mxu0 0.0
  %1163 = vmatprep.subr.mxu0 0.0
  %1164 = vmatpush1.msra.mxu0 0.0
  %1165 = vmatprep.subr.mxu0 0.0
  %1166 = vmatpush1.msra.mxu0 0.0
  %1167 = vmatprep.subr.mxu0 0.0
  %1168 = vmatpush1.msra.mxu0 0.0
  %1169 = vmatprep.subr.mxu0 0.0
  %1170 = vmatpush1.msra.mxu0 0.0
  %1171 = vmatprep.subr.mxu0 0.0
  %1172 = vmatpush1.msra.mxu0 0.0
  %1173 = vmatprep.subr.mxu0 0.0
  %1174 = vmatpush1.msra.mxu0 0.0
  %1175 = vmatprep.subr.mxu0 0.0
  %1176 = vmatpush1.msra.mxu0 0.0
  %1177 = vmatprep.subr.mxu0 0.0
  %1178 = vmatpush1.msra.mxu0 0.0
  %1179 = vmatprep.mubr.f32.mxu0 0.0
  %1180 = vmatmul.mubr.f32.gmra.mrb[0].mxu0 %v1113
  %v1181 = vpop.f32.mrb[0].mxu0
  %v1182 = vadd.f32 0.0, %v1181
  %v1183 = vpop.f32.mrb[0].mxu0
  %1184 = vdwg.mxu0
  %v1185 = vadd.f32 %v1114, %v1182
  %v1186 = vtanh.pop %v1185
  %v1187 = vld [vmem:[#allocation2 + $0x20] sm:$0xff]
  %1188 = vmatprep.subr.mxu0 0.0
  %1189 = vmatpush1.msra.mxu0 %v879
  %1190 = vmatprep.subr.mxu0 0.0
  %1191 = vmatpush1.msra.mxu0 %v880
  %1192 = vmatprep.subr.mxu0 0.0
  %1193 = vmatpush1.msra.mxu0 %v881
  %1194 = vmatprep.subr.mxu0 0.0
  %1195 = vmatpush1.msra.mxu0 %v882
  %1196 = vmatprep.subr.mxu0 0.0
  %1197 = vmatpush1.msra.mxu0 %v883
  %1198 = vmatprep.subr.mxu0 0.0
  %1199 = vmatpush1.msra.mxu0 %v884
  %1200 = vmatprep.subr.mxu0 0.0
  %1201 = vmatpush1.msra.mxu0 %v885
  %1202 = vmatprep.subr.mxu0 0.0
  %1203 = vmatpush1.msra.mxu0 %v886
  %1204 = vmatprep.subr.mxu0 0.0
  %1205 = vmatpush1.msra.mxu0 %v887
  %1206 = vmatprep.subr.mxu0 0.0
  %1207 = vmatpush1.msra.mxu0 %v888
  %1208 = vmatprep.subr.mxu0 0.0
  %1209 = vmatpush1.msra.mxu0 %v889
  %1210 = vmatprep.subr.mxu0 0.0
  %1211 = vmatpush1.msra.mxu0 %v890
  %1212 = vmatprep.subr.mxu0 0.0
  %1213 = vmatpush1.msra.mxu0 %v891
  %1214 = vmatprep.subr.mxu0 0.0
  %1215 = vmatpush1.msra.mxu0 %v892
  %1216 = vmatprep.subr.mxu0 0.0
  %1217 = vmatpush1.msra.mxu0 %v893
  %1218 = vmatprep.subr.mxu0 0.0
  %1219 = vmatpush1.msra.mxu0 %v894
  %1220 = vmatprep.subr.mxu0 0.0
  %1221 = vmatpush1.msra.mxu0 0.0
  %1222 = vmatprep.subr.mxu0 0.0
  %1223 = vmatpush1.msra.mxu0 0.0
  %1224 = vmatprep.subr.mxu0 0.0
  %1225 = vmatpush1.msra.mxu0 0.0
  %1226 = vmatprep.subr.mxu0 0.0
  %1227 = vmatpush1.msra.mxu0 0.0
  %1228 = vmatprep.subr.mxu0 0.0
  %1229 = vmatpush1.msra.mxu0 0.0
  %1230 = vmatprep.subr.mxu0 0.0
  %1231 = vmatpush1.msra.mxu0 0.0
  %1232 = vmatprep.subr.mxu0 0.0
  %1233 = vmatpush1.msra.mxu0 0.0
  %1234 = vmatprep.subr.mxu0 0.0
  %1235 = vmatpush1.msra.mxu0 0.0
  %1236 = vmatprep.subr.mxu0 0.0
  %1237 = vmatpush1.msra.mxu0 0.0
  %1238 = vmatprep.subr.mxu0 0.0
  %1239 = vmatpush1.msra.mxu0 0.0
  %1240 = vmatprep.subr.mxu0 0.0
  %1241 = vmatpush1.msra.mxu0 0.0
  %1242 = vmatprep.subr.mxu0 0.0
  %1243 = vmatpush1.msra.mxu0 0.0
  %1244 = vmatprep.subr.mxu0 0.0
  %1245 = vmatpush1.msra.mxu0 0.0
  %1246 = vmatprep.subr.mxu0 0.0
  %1247 = vmatpush1.msra.mxu0 0.0
  %1248 = vmatprep.subr.mxu0 0.0
  %1249 = vmatpush1.msra.mxu0 0.0
  %1250 = vmatprep.subr.mxu0 0.0
  %1251 = vmatpush1.msra.mxu0 0.0
  %1252 = vmatprep.mubr.f32.mxu0 0.0
  %1253 = vmatmul.mubr.f32.gmra.mrb[0].mxu0 %v1186
  %v1254 = vpop.f32.mrb[0].mxu0
  %v1255 = vadd.f32 0.0, %v1254
  %v1256 = vpop.f32.mrb[0].mxu0
  %1257 = vdwg.mxu0
  %v1258 = vadd.f32 %v1187, %v1255
  %v1259 = vtanh.pop %v1258
  %v1260 = vld [vmem:[#allocation2 + $0x28] sm:$0xff]
  %1261 = vmatprep.subr.mxu0 0.0
  %1262 = vmatpush1.msra.mxu0 %v879
  %1263 = vmatprep.subr.mxu0 0.0
  %1264 = vmatpush1.msra.mxu0 %v880
  %1265 = vmatprep.subr.mxu0 0.0
  %1266 = vmatpush1.msra.mxu0 %v881
  %1267 = vmatprep.subr.mxu0 0.0
  %1268 = vmatpush1.msra.mxu0 %v882
  %1269 = vmatprep.subr.mxu0 0.0
  %1270 = vmatpush1.msra.mxu0 %v883
  %1271 = vmatprep.subr.mxu0 0.0
  %1272 = vmatpush1.msra.mxu0 %v884
  %1273 = vmatprep.subr.mxu0 0.0
  %1274 = vmatpush1.msra.mxu0 %v885
  %1275 = vmatprep.subr.mxu0 0.0
  %1276 = vmatpush1.msra.mxu0 %v886
  %1277 = vmatprep.subr.mxu0 0.0
  %1278 = vmatpush1.msra.mxu0 %v887
  %1279 = vmatprep.subr.mxu0 0.0
  %1280 = vmatpush1.msra.mxu0 %v888
  %1281 = vmatprep.subr.mxu0 0.0
  %1282 = vmatpush1.msra.mxu0 %v889
  %1283 = vmatprep.subr.mxu0 0.0
  %1284 = vmatpush1.msra.mxu0 %v890
  %1285 = vmatprep.subr.mxu0 0.0
  %1286 = vmatpush1.msra.mxu0 %v891
  %1287 = vmatprep.subr.mxu0 0.0
  %1288 = vmatpush1.msra.mxu0 %v892
  %1289 = vmatprep.subr.mxu0 0.0
  %1290 = vmatpush1.msra.mxu0 %v893
  %1291 = vmatprep.subr.mxu0 0.0
  %1292 = vmatpush1.msra.mxu0 %v894
  %1293 = vmatprep.subr.mxu0 0.0
  %1294 = vmatpush1.msra.mxu0 0.0
  %1295 = vmatprep.subr.mxu0 0.0
  %1296 = vmatpush1.msra.mxu0 0.0
  %1297 = vmatprep.subr.mxu0 0.0
  %1298 = vmatpush1.msra.mxu0 0.0
  %1299 = vmatprep.subr.mxu0 0.0
  %1300 = vmatpush1.msra.mxu0 0.0
  %1301 = vmatprep.subr.mxu0 0.0
  %1302 = vmatpush1.msra.mxu0 0.0
  %1303 = vmatprep.subr.mxu0 0.0
  %1304 = vmatpush1.msra.mxu0 0.0
  %1305 = vmatprep.subr.mxu0 0.0
  %1306 = vmatpush1.msra.mxu0 0.0
  %1307 = vmatprep.subr.mxu0 0.0
  %1308 = vmatpush1.msra.mxu0 0.0
  %1309 = vmatprep.subr.mxu0 0.0
  %1310 = vmatpush1.msra.mxu0 0.0
  %1311 = vmatprep.subr.mxu0 0.0
  %1312 = vmatpush1.msra.mxu0 0.0
  %1313 = vmatprep.subr.mxu0 0.0
  %1314 = vmatpush1.msra.mxu0 0.0
  %1315 = vmatprep.subr.mxu0 0.0
  %1316 = vmatpush1.msra.mxu0 0.0
  %1317 = vmatprep.subr.mxu0 0.0
  %1318 = vmatpush1.msra.mxu0 0.0
  %1319 = vmatprep.subr.mxu0 0.0
  %1320 = vmatpush1.msra.mxu0 0.0
  %1321 = vmatprep.subr.mxu0 0.0
  %1322 = vmatpush1.msra.mxu0 0.0
  %1323 = vmatprep.subr.mxu0 0.0
  %1324 = vmatpush1.msra.mxu0 0.0
  %1325 = vmatprep.mubr.f32.mxu0 0.0
  %1326 = vmatmul.mubr.f32.gmra.mrb[0].mxu0 %v1259
  %v1327 = vpop.f32.mrb[0].mxu0
  %v1328 = vadd.f32 0.0, %v1327
  %v1329 = vpop.f32.mrb[0].mxu0
  %1330 = vdwg.mxu0
  %v1331 = vadd.f32 %v1260, %v1328
  %v1332 = vtanh.pop %v1331
  %v1333 = vld [vmem:[#allocation2 + $0x30] sm:$0xff]
  %1334 = vmatprep.subr.mxu0 0.0
  %1335 = vmatpush1.msra.mxu0 %v879
  %1336 = vmatprep.subr.mxu0 0.0
  %1337 = vmatpush1.msra.mxu0 %v880
  %1338 = vmatprep.subr.mxu0 0.0
  %1339 = vmatpush1.msra.mxu0 %v881
  %1340 = vmatprep.subr.mxu0 0.0
  %1341 = vmatpush1.msra.mxu0 %v882
  %1342 = vmatprep.subr.mxu0 0.0
  %1343 = vmatpush1.msra.mxu0 %v883
  %1344 = vmatprep.subr.mxu0 0.0
  %1345 = vmatpush1.msra.mxu0 %v884
  %1346 = vmatprep.subr.mxu0 0.0
  %1347 = vmatpush1.msra.mxu0 %v885
  %1348 = vmatprep.subr.mxu0 0.0
  %1349 = vmatpush1.msra.mxu0 %v886
  %1350 = vmatprep.subr.mxu0 0.0
  %1351 = vmatpush1.msra.mxu0 %v887
  %1352 = vmatprep.subr.mxu0 0.0
  %1353 = vmatpush1.msra.mxu0 %v888
  %1354 = vmatprep.subr.mxu0 0.0
  %1355 = vmatpush1.msra.mxu0 %v889
  %1356 = vmatprep.subr.mxu0 0.0
  %1357 = vmatpush1.msra.mxu0 %v890
  %1358 = vmatprep.subr.mxu0 0.0
  %1359 = vmatpush1.msra.mxu0 %v891
  %1360 = vmatprep.subr.mxu0 0.0
  %1361 = vmatpush1.msra.mxu0 %v892
  %1362 = vmatprep.subr.mxu0 0.0
  %1363 = vmatpush1.msra.mxu0 %v893
  %1364 = vmatprep.subr.mxu0 0.0
  %1365 = vmatpush1.msra.mxu0 %v894
  %1366 = vmatprep.subr.mxu0 0.0
  %1367 = vmatpush1.msra.mxu0 0.0
  %1368 = vmatprep.subr.mxu0 0.0
  %1369 = vmatpush1.msra.mxu0 0.0
  %1370 = vmatprep.subr.mxu0 0.0
  %1371 = vmatpush1.msra.mxu0 0.0
  %1372 = vmatprep.subr.mxu0 0.0
  %1373 = vmatpush1.msra.mxu0 0.0
  %1374 = vmatprep.subr.mxu0 0.0
  %1375 = vmatpush1.msra.mxu0 0.0
  %1376 = vmatprep.subr.mxu0 0.0
  %1377 = vmatpush1.msra.mxu0 0.0
  %1378 = vmatprep.subr.mxu0 0.0
  %1379 = vmatpush1.msra.mxu0 0.0
  %1380 = vmatprep.subr.mxu0 0.0
  %1381 = vmatpush1.msra.mxu0 0.0
  %1382 = vmatprep.subr.mxu0 0.0
  %1383 = vmatpush1.msra.mxu0 0.0
  %1384 = vmatprep.subr.mxu0 0.0
  %1385 = vmatpush1.msra.mxu0 0.0
  %1386 = vmatprep.subr.mxu0 0.0
  %1387 = vmatpush1.msra.mxu0 0.0
  %1388 = vmatprep.subr.mxu0 0.0
  %1389 = vmatpush1.msra.mxu0 0.0
  %1390 = vmatprep.subr.mxu0 0.0
  %1391 = vmatpush1.msra.mxu0 0.0
  %1392 = vmatprep.subr.mxu0 0.0
  %1393 = vmatpush1.msra.mxu0 0.0
  %1394 = vmatprep.subr.mxu0 0.0
  %1395 = vmatpush1.msra.mxu0 0.0
  %1396 = vmatprep.subr.mxu0 0.0
  %1397 = vmatpush1.msra.mxu0 0.0
  %1398 = vmatprep.mubr.f32.mxu0 0.0
  %1399 = vmatmul.mubr.f32.gmra.mrb[0].mxu0 %v1332
  %v1400 = vpop.f32.mrb[0].mxu0
  %v1401 = vadd.f32 0.0, %v1400
  %v1402 = vpop.f32.mrb[0].mxu0
  %1403 = vdwg.mxu0
  %v1404 = vadd.f32 %v1333, %v1401
  %v1405 = vtanh.pop %v1404
  %v1406 = vld [vmem:[#allocation2 + $0x38] sm:$0xff]
  %1407 = vmatprep.subr.mxu0 0.0
  %1408 = vmatpush1.msra.mxu0 %v879
  %1409 = vmatprep.subr.mxu0 0.0
  %1410 = vmatpush1.msra.mxu0 %v880
  %1411 = vmatprep.subr.mxu0 0.0
  %1412 = vmatpush1.msra.mxu0 %v881
  %1413 = vmatprep.subr.mxu0 0.0
  %1414 = vmatpush1.msra.mxu0 %v882
  %1415 = vmatprep.subr.mxu0 0.0
  %1416 = vmatpush1.msra.mxu0 %v883
  %1417 = vmatprep.subr.mxu0 0.0
  %1418 = vmatpush1.msra.mxu0 %v884
  %1419 = vmatprep.subr.mxu0 0.0
  %1420 = vmatpush1.msra.mxu0 %v885
  %1421 = vmatprep.subr.mxu0 0.0
  %1422 = vmatpush1.msra.mxu0 %v886
  %1423 = vmatprep.subr.mxu0 0.0
  %1424 = vmatpush1.msra.mxu0 %v887
  %1425 = vmatprep.subr.mxu0 0.0
  %1426 = vmatpush1.msra.mxu0 %v888
  %1427 = vmatprep.subr.mxu0 0.0
  %1428 = vmatpush1.msra.mxu0 %v889
  %1429 = vmatprep.subr.mxu0 0.0
  %1430 = vmatpush1.msra.mxu0 %v890
  %1431 = vmatprep.subr.mxu0 0.0
  %1432 = vmatpush1.msra.mxu0 %v891
  %1433 = vmatprep.subr.mxu0 0.0
  %1434 = vmatpush1.msra.mxu0 %v892
  %1435 = vmatprep.subr.mxu0 0.0
  %1436 = vmatpush1.msra.mxu0 %v893
  %1437 = vmatprep.subr.mxu0 0.0
  %1438 = vmatpush1.msra.mxu0 %v894
  %1439 = vmatprep.subr.mxu0 0.0
  %1440 = vmatpush1.msra.mxu0 0.0
  %1441 = vmatprep.subr.mxu0 0.0
  %1442 = vmatpush1.msra.mxu0 0.0
  %1443 = vmatprep.subr.mxu0 0.0
  %1444 = vmatpush1.msra.mxu0 0.0
  %1445 = vmatprep.subr.mxu0 0.0
  %1446 = vmatpush1.msra.mxu0 0.0
  %1447 = vmatprep.subr.mxu0 0.0
  %1448 = vmatpush1.msra.mxu0 0.0
  %1449 = vmatprep.subr.mxu0 0.0
  %1450 = vmatpush1.msra.mxu0 0.0
  %1451 = vmatprep.subr.mxu0 0.0
  %1452 = vmatpush1.msra.mxu0 0.0
  %1453 = vmatprep.subr.mxu0 0.0
  %1454 = vmatpush1.msra.mxu0 0.0
  %1455 = vmatprep.subr.mxu0 0.0
  %1456 = vmatpush1.msra.mxu0 0.0
  %1457 = vmatprep.subr.mxu0 0.0
  %1458 = vmatpush1.msra.mxu0 0.0
  %1459 = vmatprep.subr.mxu0 0.0
  %1460 = vmatpush1.msra.mxu0 0.0
  %1461 = vmatprep.subr.mxu0 0.0
  %1462 = vmatpush1.msra.mxu0 0.0
  %1463 = vmatprep.subr.mxu0 0.0
  %1464 = vmatpush1.msra.mxu0 0.0
  %1465 = vmatprep.subr.mxu0 0.0
  %1466 = vmatpush1.msra.mxu0 0.0
  %1467 = vmatprep.subr.mxu0 0.0
  %1468 = vmatpush1.msra.mxu0 0.0
  %1469 = vmatprep.subr.mxu0 0.0
  %1470 = vmatpush1.msra.mxu0 0.0
  %1471 = vmatprep.mubr.f32.mxu0 0.0
  %1472 = vmatmul.mubr.f32.gmra.mrb[0].mxu0 %v1405
  %v1473 = vpop.f32.mrb[0].mxu0
  %v1474 = vadd.f32 0.0, %v1473
  %v1475 = vpop.f32.mrb[0].mxu0
  %1476 = vdwg.mxu0
  %v1477 = vadd.f32 %v1406, %v1474
  %v1478 = vtanh.pop %v1477
  %v1479 = vld [vmem:[%s5] sm:$0xff]
  %v1480 = vld [vmem:[%s5 + $0x8] sm:$0xff]
  %v1481 = vld [vmem:[%s5 + $0x10] sm:$0xff]
  %v1482 = vld [vmem:[%s5 + $0x18] sm:$0xff]
  %v1483 = vld [vmem:[%s5 + $0x20] sm:$0xff]
  %v1484 = vld [vmem:[%s5 + $0x28] sm:$0xff]
  %v1485 = vld [vmem:[%s5 + $0x30] sm:$0xff]
  %v1486 = vld [vmem:[%s5 + $0x38] sm:$0xff]
  %v1487 = vld [vmem:[%s5 + $0x40] sm:$0xff]
  %v1488 = vld [vmem:[%s5 + $0x48] sm:$0xff]
  %v1489 = vld [vmem:[%s5 + $0x50] sm:$0xff]
  %v1490 = vld [vmem:[%s5 + $0x58] sm:$0xff]
  %v1491 = vld [vmem:[%s5 + $0x60] sm:$0xff]
  %v1492 = vld [vmem:[%s5 + $0x68] sm:$0xff]
  %v1493 = vld [vmem:[%s5 + $0x70] sm:$0xff]
  %v1494 = vld [vmem:[%s5 + $0x78] sm:$0xff]
  %v1495 = vld [vmem:[%s6] sm:$0x1]
  %v1497 = vlaneseq
  %v1498 = vshrl.u32 %v1497, 7
  %v1499 = vsub.s32 0, %v1498
  %v1500 = vrot.slane %v1495, %v1499
  %1502 = vmatprep.subr.mxu0 0.0
  %1503 = vmatpush1.msra.mxu0 %v1479
  %1504 = vmatprep.subr.mxu0 0.0
  %1505 = vmatpush1.msra.mxu0 %v1480
  %1506 = vmatprep.subr.mxu0 0.0
  %1507 = vmatpush1.msra.mxu0 %v1481
  %1508 = vmatprep.subr.mxu0 0.0
  %1509 = vmatpush1.msra.mxu0 %v1482
  %1510 = vmatprep.subr.mxu0 0.0
  %1511 = vmatpush1.msra.mxu0 %v1483
  %1512 = vmatprep.subr.mxu0 0.0
  %1513 = vmatpush1.msra.mxu0 %v1484
  %1514 = vmatprep.subr.mxu0 0.0
  %1515 = vmatpush1.msra.mxu0 %v1485
  %1516 = vmatprep.subr.mxu0 0.0
  %1517 = vmatpush1.msra.mxu0 %v1486
  %1518 = vmatprep.subr.mxu0 0.0
  %1519 = vmatpush1.msra.mxu0 %v1487
  %1520 = vmatprep.subr.mxu0 0.0
  %1521 = vmatpush1.msra.mxu0 %v1488
  %1522 = vmatprep.subr.mxu0 0.0
  %1523 = vmatpush1.msra.mxu0 %v1489
  %1524 = vmatprep.subr.mxu0 0.0
  %1525 = vmatpush1.msra.mxu0 %v1490
  %1526 = vmatprep.subr.mxu0 0.0
  %1527 = vmatpush1.msra.mxu0 %v1491
  %1528 = vmatprep.subr.mxu0 0.0
  %1529 = vmatpush1.msra.mxu0 %v1492
  %1530 = vmatprep.subr.mxu0 0.0
  %1531 = vmatpush1.msra.mxu0 %v1493
  %1532 = vmatprep.subr.mxu0 0.0
  %1533 = vmatpush1.msra.mxu0 %v1494
  %1534 = vmatprep.subr.mxu0 0.0
  %1535 = vmatpush1.msra.mxu0 0.0
  %1536 = vmatprep.subr.mxu0 0.0
  %1537 = vmatpush1.msra.mxu0 0.0
  %1538 = vmatprep.subr.mxu0 0.0
  %1539 = vmatpush1.msra.mxu0 0.0
  %1540 = vmatprep.subr.mxu0 0.0
  %1541 = vmatpush1.msra.mxu0 0.0
  %1542 = vmatprep.subr.mxu0 0.0
  %1543 = vmatpush1.msra.mxu0 0.0
  %1544 = vmatprep.subr.mxu0 0.0
  %1545 = vmatpush1.msra.mxu0 0.0
  %1546 = vmatprep.subr.mxu0 0.0
  %1547 = vmatpush1.msra.mxu0 0.0
  %1548 = vmatprep.subr.mxu0 0.0
  %1549 = vmatpush1.msra.mxu0 0.0
  %1550 = vmatprep.subr.mxu0 0.0
  %1551 = vmatpush1.msra.mxu0 0.0
  %1552 = vmatprep.subr.mxu0 0.0
  %1553 = vmatpush1.msra.mxu0 0.0
  %1554 = vmatprep.subr.mxu0 0.0
  %1555 = vmatpush1.msra.mxu0 0.0
  %1556 = vmatprep.subr.mxu0 0.0
  %1557 = vmatpush1.msra.mxu0 0.0
  %1558 = vmatprep.subr.mxu0 0.0
  %1559 = vmatpush1.msra.mxu0 0.0
  %1560 = vmatprep.subr.mxu0 0.0
  %1561 = vmatpush1.msra.mxu0 0.0
  %1562 = vmatprep.subr.mxu0 0.0
  %1563 = vmatpush1.msra.mxu0 0.0
  %1564 = vmatprep.subr.mxu0 0.0
  %1565 = vmatpush1.msra.mxu0 0.0
  %1566 = vmatprep.mubr.f32.mxu0 0.0
  %1567 = vmatmul.mubr.f32.gmra.mrb[0].mxu0 %v1478
  %v1568 = vpop.f32.mrb[0].mxu0
  %v1569 = vadd.f32 %v1500, %v1568
  %v1570 = vpop.f32.mrb[0].mxu0
  %1571 = vdwg.mxu0
  %s1572 = scalar_lea.vmem %s7, 8
  %1573 = vst [vmem:[%s1572] sm:$0xff] %v1569
  // Predicated region
  $region30: #{rnn_forward.1} parent=0 // pred_check
    _
  $region31: #{rnn_forward.1} parent=0 // pred_check_branch
    %1575 = sbr.rel (0) target = $region33
  $region32: #{rnn_forward.1} parent=0 // pred_region
    _
  $region33: #{rnn_forward.1} parent=0 // pred_fallthru
    _
  // Predicated region
  $region34: #{rnn_forward.1} parent=0 // pred_check
    _
  $region35: #{rnn_forward.1} parent=0 // pred_check_branch
    %1577 = sbr.rel (0) target = $region37
  $region36: #{rnn_forward.1} parent=0 // pred_region
    _
  $region37: #{rnn_forward.1} parent=0 // pred_fallthru
    _

</llo_original>
